<compile_context>
chip_gen: v7x
topology: tpu7x:2x2x1
jax: 0.10.0
libtpu: 0.0.40
codegen_flags: <defaults>
</compile_context>

<pallas_src>
import functools

import jax
import jax.numpy as jnp
import numpy as np
from jax.experimental import pallas as pl
from jax.experimental.pallas import tpu as pltpu


K = 5                      # conv kernel size
PAD = (K - 1) // 2         # 'same' padding
POOL = 8                   # MaxPool1d(kernel=stride=8)
NCPAD = 128                # fc output columns padded to a full lane width


def _ru8(n):
    return ((n + 7) // 8) * 8


# ------------------------------ fused kernel ------------------------------- #

def _padded_taps(x, lin):
    """K shifted (lin, C) views of x with zero 'same' padding, built in VMEM.

    Tap k's row i holds x[i + k - PAD] (zero outside range).  The padded slab
    is rounded up to a multiple of 8 rows so the tap slices stay inside it.
    """
    c = x.shape[1]
    lr = _ru8(lin + 2 * PAD)
    xp = jnp.concatenate(
        [jnp.zeros((PAD, c), x.dtype),
         x,
         jnp.zeros((lr - lin - PAD, c), x.dtype)], axis=0)      # (lr, C)
    return [xp[k:k + lin, :] for k in range(K)]


def _conv_mxu(h, w_packed, b):
    """Same-padded conv + bias + ReLU as ONE MXU dot (taps packed into depth).

    h: (L, Cin) f32, w_packed: (K*Cin, Cout), b: (1, Cout).
    """
    lin = h.shape[0]
    taps = jnp.concatenate(_padded_taps(h, lin), axis=1)         # (L, K*Cin)
    y = jnp.dot(taps, w_packed, preferred_element_type=jnp.float32)
    return jnp.maximum(y + b, 0.0)


def fused_forward_kernel(x_ref, w1_ref, b1_ref, w2_ref, b2_ref,
                         w3_ref, b3_ref, w4_ref, b4_ref,
                         wfc_ref, bfc_ref, o_ref):
    """Entire Conv1DModel forward for one batch element, activations in VMEM.

    x_ref:  (1, L, 1)           w1_ref: (8, 256)   (rows 5..7 zero)
    w2_ref: (5*256, 128)        w3/w4:  (5*128, 128)
    wfc_ref:(Lp, 128, 128)      b*_ref: (1, C)     o_ref: (1, 1, 128)
    """
    L = x_ref.shape[1]
    Lp = L // POOL

    # ---- conv1 (Cin=1) + ReLU: 5 broadcast FMAs on the VPU -> (L, 256)
    x0 = x_ref[0]                                    # (L, 1)
    w1 = w1_ref[...]                                 # (8, 256)
    taps1 = _padded_taps(x0, L)
    a = jnp.zeros((L, w1.shape[1]), jnp.float32)
    for k in range(K):
        a = a + taps1[k] * w1[k:k + 1, :]            # (L,1)*(1,256)
    a = jnp.maximum(a + b1_ref[...], 0.0)

    # ---- conv2 (256->128) + ReLU: single MXU dot of depth 5*256 = 1280
    a = _conv_mxu(a, w2_ref[...], b2_ref[...])       # (L, 128)

    # dropout1: identity at inference

    # ---- maxpool(8) over length, fused (no HBM round trip)
    a = jnp.max(a.reshape(Lp, POOL, a.shape[1]), axis=1)   # (Lp, 128)

    # ---- conv3 / conv4 (128->128) + ReLU: depth-640 MXU dots
    a = _conv_mxu(a, w3_ref[...], b3_ref[...])       # (Lp, 128)
    a = _conv_mxu(a, w4_ref[...], b4_ref[...])       # (Lp, 128)

    # dropout2: identity at inference

    # ---- flatten + fc, lane-dense (classes padded to 128 columns)
    acc = jnp.zeros((1, o_ref.shape[2]), jnp.float32)
    for l in range(Lp):
        acc = acc + jnp.dot(a[l:l + 1, :], wfc_ref[l],
                            preferred_element_type=jnp.float32)
    o_ref[0] = (acc + bfc_ref[...]).astype(o_ref.dtype)


# ------------------------------ host wrapper -------------------------------- #

@functools.partial(jax.jit, static_argnames=("num_classes",))
def conv1d_model_forward(x_ncl, kp, num_classes):
    """x_ncl: (N, 1, L) PyTorch NCL input. Returns (N, num_classes)."""
    N, Cin, L = x_ncl.shape
    assert Cin == 1 and L % POOL == 0 and K % 2 == 1
    x_nlc = x_ncl.reshape(N, L, 1)        # free: C == 1, pure metadata reshape

    out = pl.pallas_call(
        fused_forward_kernel,
        out_shape=jax.ShapeDtypeStruct((N, 1, NCPAD), jnp.float32),
        grid=(N,),
        in_specs=[
            pl.BlockSpec((1, L, 1), lambda n: (n, 0, 0)),
            pl.BlockSpec(kp["w1"].shape, lambda n: (0, 0)),
            pl.BlockSpec(kp["b1"].shape, lambda n: (0, 0)),
            pl.BlockSpec(kp["w2"].shape, lambda n: (0, 0)),
            pl.BlockSpec(kp["b2"].shape, lambda n: (0, 0)),
            pl.BlockSpec(kp["w3"].shape, lambda n: (0, 0)),
            pl.BlockSpec(kp["b3"].shape, lambda n: (0, 0)),
            pl.BlockSpec(kp["w4"].shape, lambda n: (0, 0)),
            pl.BlockSpec(kp["b4"].shape, lambda n: (0, 0)),
            pl.BlockSpec(kp["wfc"].shape, lambda n: (0, 0, 0)),
            pl.BlockSpec(kp["bfc"].shape, lambda n: (0, 0)),
        ],
        out_specs=pl.BlockSpec((1, 1, NCPAD), lambda n: (n, 0, 0)),
        compiler_params=pltpu.CompilerParams(
            dimension_semantics=("parallel",),
            vmem_limit_bytes=32 * 1024 * 1024),
    )(x_nlc, kp["w1"], kp["b1"], kp["w2"], kp["b2"],
      kp["w3"], kp["b3"], kp["w4"], kp["b4"], kp["wfc"], kp["bfc"])

    return out.reshape(N, NCPAD)[:, :num_classes]


# --------------------------- parameters & remapping ------------------------- #

def make_torch_params(key, input_length, num_classes):
    """Deterministic params in the original PyTorch layouts."""
    assert input_length % POOL == 0
    ks = jax.random.split(key, 10)

    def w(k, shape):
        return jax.random.normal(k, shape, jnp.float32) * 0.05

    pooled = input_length // POOL
    return {
        "w1": w(ks[0], (256, 1, K)),   "b1": w(ks[1], (256,)),
        "w2": w(ks[2], (128, 256, K)), "b2": w(ks[3], (128,)),
        "w3": w(ks[4], (128, 128, K)), "b3": w(ks[5], (128,)),
        "w4": w(ks[6], (128, 128, K)), "b4": w(ks[7], (128,)),
        "wfc": w(ks[8], (num_classes, 128 * pooled)),
        "bfc": w(ks[9], (num_classes,)),
    }


def to_kernel_params(tp, num_classes):
    """Remap PyTorch layouts to the fused kernel's MXU-friendly layouts."""
    def conv_packed(w_oik):
        # (Cout, Cin, K) -> (K, Cin, Cout) -> (K*Cin, Cout): taps packed into
        # the contraction axis, matching the in-kernel im2col column order.
        cout, cin, k = w_oik.shape
        return jnp.transpose(w_oik, (2, 1, 0)).reshape(k * cin, cout)

    # conv1 (Cin=1): (256, 1, K) -> (K, 256), sublane-padded to 8 rows.
    w1 = jnp.transpose(tp["w1"][:, 0, :], (1, 0))
    w1 = jnp.pad(w1, ((0, 8 - K), (0, 0)))

    # fc: PyTorch flattens (N, C, Lp) with feature index c*Lp + l; kernel
    # consumes per-pooled-position (C, out) blocks: wfc3[l, c, o] = W[o, c*Lp+l].
    nc, feat = tp["wfc"].shape
    C = 128
    Lp = feat // C
    wfc3 = jnp.transpose(tp["wfc"].reshape(nc, C, Lp), (2, 1, 0))   # (Lp, C, nc)
    wfc3 = jnp.pad(wfc3, ((0, 0), (0, 0), (0, NCPAD - nc)))         # lane-dense
    bfc = jnp.pad(tp["bfc"], (0, NCPAD - nc))[None, :]

    return {
        "w1": w1, "b1": tp["b1"][None, :],
        "w2": conv_packed(tp["w2"]), "b2": tp["b2"][None, :],
        "w3": conv_packed(tp["w3"]), "b3": tp["b3"][None, :],
        "w4": conv_packed(tp["w4"]), "b4": tp["b4"][None, :],
        "wfc": wfc3, "bfc": bfc,
    }


# ----------------------------- pure-JAX reference --------------------------- #

def ref_forward(x_ncl, tp, pool=POOL):
    """Direct PyTorch-semantics forward (NCL) using lax, on the torch params."""
    def conv(x, w_oik, b):
        y = jax.lax.conv_general_dilated(
            x, w_oik, window_strides=(1,), padding=[(PAD, PAD)],
            dimension_numbers=("NCH", "OIH", "NCH"))
        return jax.nn.relu(y + b[None, :, None])

    x = conv(x_ncl, tp["w1"], tp["b1"])
    x = conv(x, tp["w2"], tp["b2"])
    N, C, L = x.shape
    x = x.reshape(N, C, L // pool, pool).max(axis=3)
    x = conv(x, tp["w3"], tp["b3"])
    x = conv(x, tp["w4"], tp["b4"])
    x = x.reshape(N, -1)                       # torch flatten order (c*Lp + l)
    return x @ tp["wfc"].T + tp["bfc"]


# ------------------------------------ main ----------------------------------- #

if __name__ == "__main__":
    batch = 2
    input_length = 16          # must be divisible by 8
    num_classes = 8

    key = jax.random.PRNGKey(0)
    kx, kparam = jax.random.split(key)

    x = jax.random.normal(kx, (batch, 1, input_length), jnp.float32)   # NCL
    torch_params = make_torch_params(kparam, input_length, num_classes)
    kernel_params = to_kernel_params(torch_params, num_classes)

    out = conv1d_model_forward(x, kernel_params, num_classes=num_classes)
    out = jax.block_until_ready(out)

    ref = ref_forward(x, torch_params)
    np.testing.assert_allclose(np.asarray(out), np.asarray(ref),
                               rtol=1e-4, atol=1e-4)

    assert out.shape == (batch, num_classes)
    print("KERNEL_OK")
</pallas_src>

<mosaic_0001>
module attributes {stable_mosaic.version = 11 : i64} {
  func.func @fused_forward_kernel(%arg0: i32, %arg1: memref<1x16x1xf32, #tpu.memory_space<vmem>>, %arg2: memref<8x256xf32, #tpu.memory_space<vmem>>, %arg3: memref<1x256xf32, #tpu.memory_space<vmem>>, %arg4: memref<1280x128xf32, #tpu.memory_space<vmem>>, %arg5: memref<1x128xf32, #tpu.memory_space<vmem>>, %arg6: memref<640x128xf32, #tpu.memory_space<vmem>>, %arg7: memref<1x128xf32, #tpu.memory_space<vmem>>, %arg8: memref<640x128xf32, #tpu.memory_space<vmem>>, %arg9: memref<1x128xf32, #tpu.memory_space<vmem>>, %arg10: memref<2x128x128xf32, #tpu.memory_space<vmem>>, %arg11: memref<1x128xf32, #tpu.memory_space<vmem>>, %arg12: memref<1x1x128xf32, #tpu.memory_space<vmem>>) attributes {dimension_semantics = [#tpu.dimension_semantics<parallel>], iteration_bounds = array<i64: 2>, scalar_prefetch = 0 : i64, scratch_operands = 0 : i64, tpu.core_type = #tpu.core_type<tc>, window_params = [{transform_indices = @transform_0, window_bounds = array<i64: 1, 16, 1>}, {pipeline_mode = #tpu.pipeline_mode<synchronous>, transform_indices = @transform_1, window_bounds = array<i64: 8, 256>}, {pipeline_mode = #tpu.pipeline_mode<synchronous>, transform_indices = @transform_2, window_bounds = array<i64: 1, 256>}, {pipeline_mode = #tpu.pipeline_mode<synchronous>, transform_indices = @transform_3, window_bounds = array<i64: 1280, 128>}, {pipeline_mode = #tpu.pipeline_mode<synchronous>, transform_indices = @transform_4, window_bounds = array<i64: 1, 128>}, {pipeline_mode = #tpu.pipeline_mode<synchronous>, transform_indices = @transform_5, window_bounds = array<i64: 640, 128>}, {pipeline_mode = #tpu.pipeline_mode<synchronous>, transform_indices = @transform_6, window_bounds = array<i64: 1, 128>}, {pipeline_mode = #tpu.pipeline_mode<synchronous>, transform_indices = @transform_7, window_bounds = array<i64: 640, 128>}, {pipeline_mode = #tpu.pipeline_mode<synchronous>, transform_indices = @transform_8, window_bounds = array<i64: 1, 128>}, {pipeline_mode = #tpu.pipeline_mode<synchronous>, transform_indices = @transform_9, window_bounds = array<i64: 2, 128, 128>}, {pipeline_mode = #tpu.pipeline_mode<synchronous>, transform_indices = @transform_10, window_bounds = array<i64: 1, 128>}, {transform_indices = @transform_11, window_bounds = array<i64: 1, 1, 128>}]} {
    %c0 = arith.constant 0 : index
    %c0_0 = arith.constant 0 : index
    %c0_1 = arith.constant 0 : index
    %0 = vector.load %arg1[%c0, %c0_0, %c0_1] : memref<1x16x1xf32, #tpu.memory_space<vmem>>, vector<1x16x1xf32>
    %1 = vector.shape_cast %0 : vector<1x16x1xf32> to vector<16x1xf32>
    %c0_2 = arith.constant 0 : index
    %c0_3 = arith.constant 0 : index
    %2 = vector.load %arg2[%c0_2, %c0_3] : memref<8x256xf32, #tpu.memory_space<vmem>>, vector<8x256xf32>
    %cst = arith.constant 0.000000e+00 : f32
    %3 = vector.broadcast %cst : f32 to vector<2x1xf32>
    %cst_4 = arith.constant 0.000000e+00 : f32
    %4 = vector.broadcast %cst_4 : f32 to vector<6x1xf32>
    %5 = tpu.concatenate %3, %1, %4 in 0 : vector<2x1xf32>, vector<16x1xf32>, vector<6x1xf32> -> vector<24x1xf32>
    %6 = vector.extract_strided_slice %5 {offsets = [0, 0], sizes = [16, 1], strides = [1, 1]} : vector<24x1xf32> to vector<16x1xf32>
    %7 = vector.extract_strided_slice %5 {offsets = [1, 0], sizes = [16, 1], strides = [1, 1]} : vector<24x1xf32> to vector<16x1xf32>
    %8 = vector.extract_strided_slice %5 {offsets = [2, 0], sizes = [16, 1], strides = [1, 1]} : vector<24x1xf32> to vector<16x1xf32>
    %9 = vector.extract_strided_slice %5 {offsets = [3, 0], sizes = [16, 1], strides = [1, 1]} : vector<24x1xf32> to vector<16x1xf32>
    %10 = vector.extract_strided_slice %5 {offsets = [4, 0], sizes = [16, 1], strides = [1, 1]} : vector<24x1xf32> to vector<16x1xf32>
    %cst_5 = arith.constant 0.000000e+00 : f32
    %11 = vector.broadcast %cst_5 : f32 to vector<16x256xf32>
    %12 = vector.extract_strided_slice %2 {offsets = [0, 0], sizes = [1, 256], strides = [1, 1]} : vector<8x256xf32> to vector<1x256xf32>
    %13 = vector.broadcast %6 : vector<16x1xf32> to vector<16x256xf32>
    %14 = vector.broadcast %12 : vector<1x256xf32> to vector<16x256xf32>
    %15 = arith.mulf %13, %14 : vector<16x256xf32>
    %16 = arith.addf %11, %15 : vector<16x256xf32>
    %17 = vector.extract_strided_slice %2 {offsets = [1, 0], sizes = [1, 256], strides = [1, 1]} : vector<8x256xf32> to vector<1x256xf32>
    %18 = vector.broadcast %7 : vector<16x1xf32> to vector<16x256xf32>
    %19 = vector.broadcast %17 : vector<1x256xf32> to vector<16x256xf32>
    %20 = arith.mulf %18, %19 : vector<16x256xf32>
    %21 = arith.addf %16, %20 : vector<16x256xf32>
    %22 = vector.extract_strided_slice %2 {offsets = [2, 0], sizes = [1, 256], strides = [1, 1]} : vector<8x256xf32> to vector<1x256xf32>
    %23 = vector.broadcast %8 : vector<16x1xf32> to vector<16x256xf32>
    %24 = vector.broadcast %22 : vector<1x256xf32> to vector<16x256xf32>
    %25 = arith.mulf %23, %24 : vector<16x256xf32>
    %26 = arith.addf %21, %25 : vector<16x256xf32>
    %27 = vector.extract_strided_slice %2 {offsets = [3, 0], sizes = [1, 256], strides = [1, 1]} : vector<8x256xf32> to vector<1x256xf32>
    %28 = vector.broadcast %9 : vector<16x1xf32> to vector<16x256xf32>
    %29 = vector.broadcast %27 : vector<1x256xf32> to vector<16x256xf32>
    %30 = arith.mulf %28, %29 : vector<16x256xf32>
    %31 = arith.addf %26, %30 : vector<16x256xf32>
    %32 = vector.extract_strided_slice %2 {offsets = [4, 0], sizes = [1, 256], strides = [1, 1]} : vector<8x256xf32> to vector<1x256xf32>
    %33 = vector.broadcast %10 : vector<16x1xf32> to vector<16x256xf32>
    %34 = vector.broadcast %32 : vector<1x256xf32> to vector<16x256xf32>
    %35 = arith.mulf %33, %34 : vector<16x256xf32>
    %36 = arith.addf %31, %35 : vector<16x256xf32>
    %c0_6 = arith.constant 0 : index
    %c0_7 = arith.constant 0 : index
    %37 = vector.load %arg3[%c0_6, %c0_7] : memref<1x256xf32, #tpu.memory_space<vmem>>, vector<1x256xf32>
    %38 = vector.broadcast %37 : vector<1x256xf32> to vector<16x256xf32>
    %39 = arith.addf %36, %38 : vector<16x256xf32>
    %cst_8 = arith.constant 0.000000e+00 : f32
    %40 = vector.broadcast %cst_8 : f32 to vector<16x256xf32>
    %41 = arith.maximumf %39, %40 : vector<16x256xf32>
    %c0_9 = arith.constant 0 : index
    %c0_10 = arith.constant 0 : index
    %42 = vector.load %arg4[%c0_9, %c0_10] : memref<1280x128xf32, #tpu.memory_space<vmem>>, vector<1280x128xf32>
    %c0_11 = arith.constant 0 : index
    %c0_12 = arith.constant 0 : index
    %43 = vector.load %arg5[%c0_11, %c0_12] : memref<1x128xf32, #tpu.memory_space<vmem>>, vector<1x128xf32>
    %cst_13 = arith.constant 0.000000e+00 : f32
    %44 = vector.broadcast %cst_13 : f32 to vector<2x256xf32>
    %cst_14 = arith.constant 0.000000e+00 : f32
    %45 = vector.broadcast %cst_14 : f32 to vector<6x256xf32>
    %46 = tpu.concatenate %44, %41, %45 in 0 : vector<2x256xf32>, vector<16x256xf32>, vector<6x256xf32> -> vector<24x256xf32>
    %47 = vector.extract_strided_slice %46 {offsets = [0, 0], sizes = [16, 256], strides = [1, 1]} : vector<24x256xf32> to vector<16x256xf32>
    %48 = vector.extract_strided_slice %46 {offsets = [1, 0], sizes = [16, 256], strides = [1, 1]} : vector<24x256xf32> to vector<16x256xf32>
    %49 = vector.extract_strided_slice %46 {offsets = [2, 0], sizes = [16, 256], strides = [1, 1]} : vector<24x256xf32> to vector<16x256xf32>
    %50 = vector.extract_strided_slice %46 {offsets = [3, 0], sizes = [16, 256], strides = [1, 1]} : vector<24x256xf32> to vector<16x256xf32>
    %51 = vector.extract_strided_slice %46 {offsets = [4, 0], sizes = [16, 256], strides = [1, 1]} : vector<24x256xf32> to vector<16x256xf32>
    %52 = tpu.concatenate %47, %48, %49, %50, %51 in 1 : vector<16x256xf32>, vector<16x256xf32>, vector<16x256xf32>, vector<16x256xf32>, vector<16x256xf32> -> vector<16x1280xf32>
    %cst_15 = arith.constant dense<0.000000e+00> : vector<16x128xf32>
    %53 = tpu.matmul %52, %42, %cst_15 {dimension_numbers = #tpu.dot_dimension_numbers<[1], [0], [0], [1], [0, 0, 1, 1], [], []>} : vector<16x1280xf32>, vector<1280x128xf32>, vector<16x128xf32> -> vector<16x128xf32>
    %54 = vector.broadcast %43 : vector<1x128xf32> to vector<16x128xf32>
    %55 = arith.addf %53, %54 : vector<16x128xf32>
    %cst_16 = arith.constant 0.000000e+00 : f32
    %56 = vector.broadcast %cst_16 : f32 to vector<16x128xf32>
    %57 = arith.maximumf %55, %56 : vector<16x128xf32>
    %58 = vector.shape_cast %57 : vector<16x128xf32> to vector<2x8x128xf32>
    %cst_17 = arith.constant dense<0xFF800000> : vector<2x128xf32>
    %59 = vector.multi_reduction <maximumf>, %58, %cst_17 [1] : vector<2x8x128xf32> to vector<2x128xf32>
    %c0_18 = arith.constant 0 : index
    %c0_19 = arith.constant 0 : index
    %60 = vector.load %arg6[%c0_18, %c0_19] : memref<640x128xf32, #tpu.memory_space<vmem>>, vector<640x128xf32>
    %c0_20 = arith.constant 0 : index
    %c0_21 = arith.constant 0 : index
    %61 = vector.load %arg7[%c0_20, %c0_21] : memref<1x128xf32, #tpu.memory_space<vmem>>, vector<1x128xf32>
    %cst_22 = arith.constant 0.000000e+00 : f32
    %62 = vector.broadcast %cst_22 : f32 to vector<2x128xf32>
    %cst_23 = arith.constant 0.000000e+00 : f32
    %63 = vector.broadcast %cst_23 : f32 to vector<4x128xf32>
    %64 = tpu.concatenate %62, %59, %63 in 0 : vector<2x128xf32>, vector<2x128xf32>, vector<4x128xf32> -> vector<8x128xf32>
    %65 = vector.extract_strided_slice %64 {offsets = [0, 0], sizes = [2, 128], strides = [1, 1]} : vector<8x128xf32> to vector<2x128xf32>
    %66 = vector.extract_strided_slice %64 {offsets = [1, 0], sizes = [2, 128], strides = [1, 1]} : vector<8x128xf32> to vector<2x128xf32>
    %67 = vector.extract_strided_slice %64 {offsets = [2, 0], sizes = [2, 128], strides = [1, 1]} : vector<8x128xf32> to vector<2x128xf32>
    %68 = vector.extract_strided_slice %64 {offsets = [3, 0], sizes = [2, 128], strides = [1, 1]} : vector<8x128xf32> to vector<2x128xf32>
    %69 = vector.extract_strided_slice %64 {offsets = [4, 0], sizes = [2, 128], strides = [1, 1]} : vector<8x128xf32> to vector<2x128xf32>
    %70 = tpu.concatenate %65, %66, %67, %68, %69 in 1 : vector<2x128xf32>, vector<2x128xf32>, vector<2x128xf32>, vector<2x128xf32>, vector<2x128xf32> -> vector<2x640xf32>
    %cst_24 = arith.constant dense<0.000000e+00> : vector<2x128xf32>
    %71 = tpu.matmul %70, %60, %cst_24 {dimension_numbers = #tpu.dot_dimension_numbers<[1], [0], [0], [1], [0, 0, 1, 1], [], []>} : vector<2x640xf32>, vector<640x128xf32>, vector<2x128xf32> -> vector<2x128xf32>
    %72 = vector.broadcast %61 : vector<1x128xf32> to vector<2x128xf32>
    %73 = arith.addf %71, %72 : vector<2x128xf32>
    %cst_25 = arith.constant 0.000000e+00 : f32
    %74 = vector.broadcast %cst_25 : f32 to vector<2x128xf32>
    %75 = arith.maximumf %73, %74 : vector<2x128xf32>
    %c0_26 = arith.constant 0 : index
    %c0_27 = arith.constant 0 : index
    %76 = vector.load %arg8[%c0_26, %c0_27] : memref<640x128xf32, #tpu.memory_space<vmem>>, vector<640x128xf32>
    %c0_28 = arith.constant 0 : index
    %c0_29 = arith.constant 0 : index
    %77 = vector.load %arg9[%c0_28, %c0_29] : memref<1x128xf32, #tpu.memory_space<vmem>>, vector<1x128xf32>
    %cst_30 = arith.constant 0.000000e+00 : f32
    %78 = vector.broadcast %cst_30 : f32 to vector<2x128xf32>
    %cst_31 = arith.constant 0.000000e+00 : f32
    %79 = vector.broadcast %cst_31 : f32 to vector<4x128xf32>
    %80 = tpu.concatenate %78, %75, %79 in 0 : vector<2x128xf32>, vector<2x128xf32>, vector<4x128xf32> -> vector<8x128xf32>
    %81 = vector.extract_strided_slice %80 {offsets = [0, 0], sizes = [2, 128], strides = [1, 1]} : vector<8x128xf32> to vector<2x128xf32>
    %82 = vector.extract_strided_slice %80 {offsets = [1, 0], sizes = [2, 128], strides = [1, 1]} : vector<8x128xf32> to vector<2x128xf32>
    %83 = vector.extract_strided_slice %80 {offsets = [2, 0], sizes = [2, 128], strides = [1, 1]} : vector<8x128xf32> to vector<2x128xf32>
    %84 = vector.extract_strided_slice %80 {offsets = [3, 0], sizes = [2, 128], strides = [1, 1]} : vector<8x128xf32> to vector<2x128xf32>
    %85 = vector.extract_strided_slice %80 {offsets = [4, 0], sizes = [2, 128], strides = [1, 1]} : vector<8x128xf32> to vector<2x128xf32>
    %86 = tpu.concatenate %81, %82, %83, %84, %85 in 1 : vector<2x128xf32>, vector<2x128xf32>, vector<2x128xf32>, vector<2x128xf32>, vector<2x128xf32> -> vector<2x640xf32>
    %cst_32 = arith.constant dense<0.000000e+00> : vector<2x128xf32>
    %87 = tpu.matmul %86, %76, %cst_32 {dimension_numbers = #tpu.dot_dimension_numbers<[1], [0], [0], [1], [0, 0, 1, 1], [], []>} : vector<2x640xf32>, vector<640x128xf32>, vector<2x128xf32> -> vector<2x128xf32>
    %88 = vector.broadcast %77 : vector<1x128xf32> to vector<2x128xf32>
    %89 = arith.addf %87, %88 : vector<2x128xf32>
    %cst_33 = arith.constant 0.000000e+00 : f32
    %90 = vector.broadcast %cst_33 : f32 to vector<2x128xf32>
    %91 = arith.maximumf %89, %90 : vector<2x128xf32>
    %cst_34 = arith.constant 0.000000e+00 : f32
    %92 = vector.broadcast %cst_34 : f32 to vector<1x128xf32>
    %93 = vector.extract_strided_slice %91 {offsets = [0, 0], sizes = [1, 128], strides = [1, 1]} : vector<2x128xf32> to vector<1x128xf32>
    %c0_35 = arith.constant 0 : index
    %c0_36 = arith.constant 0 : index
    %c0_37 = arith.constant 0 : index
    %94 = vector.load %arg10[%c0_35, %c0_36, %c0_37] : memref<2x128x128xf32, #tpu.memory_space<vmem>>, vector<1x128x128xf32>
    %95 = vector.shape_cast %94 : vector<1x128x128xf32> to vector<128x128xf32>
    %cst_38 = arith.constant dense<0.000000e+00> : vector<1x128xf32>
    %96 = tpu.matmul %93, %95, %cst_38 {dimension_numbers = #tpu.dot_dimension_numbers<[1], [0], [0], [1], [0, 0, 1, 1], [], []>} : vector<1x128xf32>, vector<128x128xf32>, vector<1x128xf32> -> vector<1x128xf32>
    %97 = arith.addf %92, %96 : vector<1x128xf32>
    %98 = vector.extract_strided_slice %91 {offsets = [1, 0], sizes = [1, 128], strides = [1, 1]} : vector<2x128xf32> to vector<1x128xf32>
    %c1 = arith.constant 1 : index
    %c0_39 = arith.constant 0 : index
    %c0_40 = arith.constant 0 : index
    %99 = vector.load %arg10[%c1, %c0_39, %c0_40] : memref<2x128x128xf32, #tpu.memory_space<vmem>>, vector<1x128x128xf32>
    %100 = vector.shape_cast %99 : vector<1x128x128xf32> to vector<128x128xf32>
    %cst_41 = arith.constant dense<0.000000e+00> : vector<1x128xf32>
    %101 = tpu.matmul %98, %100, %cst_41 {dimension_numbers = #tpu.dot_dimension_numbers<[1], [0], [0], [1], [0, 0, 1, 1], [], []>} : vector<1x128xf32>, vector<128x128xf32>, vector<1x128xf32> -> vector<1x128xf32>
    %102 = arith.addf %97, %101 : vector<1x128xf32>
    %c0_42 = arith.constant 0 : index
    %c0_43 = arith.constant 0 : index
    %103 = vector.load %arg11[%c0_42, %c0_43] : memref<1x128xf32, #tpu.memory_space<vmem>>, vector<1x128xf32>
    %104 = arith.addf %102, %103 : vector<1x128xf32>
    %c0_44 = arith.constant 0 : index
    %c0_45 = arith.constant 0 : index
    %c0_46 = arith.constant 0 : index
    %105 = vector.load %arg12[%c0_44, %c0_45, %c0_46] : memref<1x1x128xf32, #tpu.memory_space<vmem>>, vector<1x1x128xf32>
    %106 = vector.shape_cast %105 : vector<1x1x128xf32> to vector<1x128xf32>
    %107 = vector.shape_cast %104 : vector<1x128xf32> to vector<1x1x128xf32>
    tpu.vector_store %arg12[%c0_44, %c0_45, %c0_46], %107 {strides = array<i32>} : memref<1x1x128xf32, #tpu.memory_space<vmem>>, vector<1x1x128xf32>,
    return
  }
  func.func @transform_0(%arg0: i32) -> (i32, i32, i32) {
    %c0_i32 = arith.constant 0 : i32
    %c0_i32_0 = arith.constant 0 : i32
    %c0_i32_1 = arith.constant 0 : i32
    return %arg0, %c0_i32, %c0_i32_0 : i32, i32, i32
  }
  func.func @transform_1(%arg0: i32) -> (i32, i32) {
    %c0_i32 = arith.constant 0 : i32
    %c0_i32_0 = arith.constant 0 : i32
    %c0_i32_1 = arith.constant 0 : i32
    return %c0_i32, %c0_i32_0 : i32, i32
  }
  func.func @transform_2(%arg0: i32) -> (i32, i32) {
    %c0_i32 = arith.constant 0 : i32
    %c0_i32_0 = arith.constant 0 : i32
    %c0_i32_1 = arith.constant 0 : i32
    return %c0_i32, %c0_i32_0 : i32, i32
  }
  func.func @transform_3(%arg0: i32) -> (i32, i32) {
    %c0_i32 = arith.constant 0 : i32
    %c0_i32_0 = arith.constant 0 : i32
    %c0_i32_1 = arith.constant 0 : i32
    return %c0_i32, %c0_i32_0 : i32, i32
  }
  func.func @transform_4(%arg0: i32) -> (i32, i32) {
    %c0_i32 = arith.constant 0 : i32
    %c0_i32_0 = arith.constant 0 : i32
    %c0_i32_1 = arith.constant 0 : i32
    return %c0_i32, %c0_i32_0 : i32, i32
  }
  func.func @transform_5(%arg0: i32) -> (i32, i32) {
    %c0_i32 = arith.constant 0 : i32
    %c0_i32_0 = arith.constant 0 : i32
    %c0_i32_1 = arith.constant 0 : i32
    return %c0_i32, %c0_i32_0 : i32, i32
  }
  func.func @transform_6(%arg0: i32) -> (i32, i32) {
    %c0_i32 = arith.constant 0 : i32
    %c0_i32_0 = arith.constant 0 : i32
    %c0_i32_1 = arith.constant 0 : i32
    return %c0_i32, %c0_i32_0 : i32, i32
  }
  func.func @transform_7(%arg0: i32) -> (i32, i32) {
    %c0_i32 = arith.constant 0 : i32
    %c0_i32_0 = arith.constant 0 : i32
    %c0_i32_1 = arith.constant 0 : i32
    return %c0_i32, %c0_i32_0 : i32, i32
  }
  func.func @transform_8(%arg0: i32) -> (i32, i32) {
    %c0_i32 = arith.constant 0 : i32
    %c0_i32_0 = arith.constant 0 : i32
    %c0_i32_1 = arith.constant 0 : i32
    return %c0_i32, %c0_i32_0 : i32, i32
  }
  func.func @transform_9(%arg0: i32) -> (i32, i32, i32) {
    %c0_i32 = arith.constant 0 : i32
    %c0_i32_0 = arith.constant 0 : i32
    %c0_i32_1 = arith.constant 0 : i32
    %c0_i32_2 = arith.constant 0 : i32
    return %c0_i32, %c0_i32_0, %c0_i32_1 : i32, i32, i32
  }
  func.func @transform_10(%arg0: i32) -> (i32, i32) {
    %c0_i32 = arith.constant 0 : i32
    %c0_i32_0 = arith.constant 0 : i32
    %c0_i32_1 = arith.constant 0 : i32
    return %c0_i32, %c0_i32_0 : i32, i32
  }
  func.func @transform_11(%arg0: i32) -> (i32, i32, i32) {
    %c0_i32 = arith.constant 0 : i32
    %c0_i32_0 = arith.constant 0 : i32
    %c0_i32_1 = arith.constant 0 : i32
    return %arg0, %c0_i32, %c0_i32_0 : i32, i32, i32
  }
}

</mosaic_0001>

<llo_original>
// kernel: conv1d_model_forward.1
$region0: #{conv1d_model_forward.1}
  #allocation0 [shape = 'u32[]', space=smem, size = 0x4, offset = 0x4, fixed_abs, tag = 'smem constant byte address 0x4 - core index']
  #allocation1 [shape = 'u32[144,128]{1,0:T(1,128)}', space=vmem, size = 0x12000, scoped, tag = 'internal scratch']
  %s0 = inlined_call_operand.vmem [shape: f32[2,16,1], index: 0, kind: input, shape index: {}]
  %s1 = inlined_call_operand.vmem [shape: f32[8,256], index: 1, kind: input, shape index: {}]
  %s2 = inlined_call_operand.vmem [shape: f32[1,256], index: 2, kind: input, shape index: {}]
  %s3 = inlined_call_operand.hbm [shape: f32[1280,128], index: 3, kind: input, shape index: {}]
  %s4 = inlined_call_operand.vmem [shape: f32[1,128], index: 4, kind: input, shape index: {}]
  %s5 = inlined_call_operand.hbm [shape: f32[640,128], index: 5, kind: input, shape index: {}]
  %s6 = inlined_call_operand.vmem [shape: f32[1,128], index: 6, kind: input, shape index: {}]
  %s7 = inlined_call_operand.hbm [shape: f32[640,128], index: 7, kind: input, shape index: {}]
  %s8 = inlined_call_operand.vmem [shape: f32[1,128], index: 8, kind: input, shape index: {}]
  %s9 = inlined_call_operand.hbm [shape: f32[2,128,128], index: 9, kind: input, shape index: {}]
  %s10 = inlined_call_operand.vmem [shape: f32[1,128], index: 10, kind: input, shape index: {}]
  %s11 = inlined_call_operand.hbm [shape: f32[2,1,128], index: 11, kind: output, shape index: {}]
  %s12 = sld [smem:[#allocation0]]
  $region93: #{conv1d_model_forward.1} parent=0
    _
  %s14 = ssub.s32 1, %s12
  %s15 = scalar_select 0, %s14, %s12
  $region1: #{conv1d_model_forward.1} parent=0
    #allocation2 [shape = 'u8[655360]{0}', space=vmem, size = 0xa0000, scoped, tag = 'input window, operand 3, single buffered']
    #allocation3 [shape = 's32[2]{0}', space=sflag, size = 0x8, scoped, tag = 'scoped memory for conv1d_model_forward.1']
    #allocation4 [shape = 's32[2]{0}', space=sflag, size = 0x8, scoped, tag = 'scoped memory for conv1d_model_forward.1']
    #allocation5 [shape = 'u8[327680]{0}', space=vmem, size = 0x50000, scoped, tag = 'input window, operand 5, single buffered']
    #allocation6 [shape = 's32[1]{0}', space=sflag, size = 0x4, scoped, tag = 'scoped memory for conv1d_model_forward.1']
    #allocation7 [shape = 'u8[327680]{0}', space=vmem, size = 0x50000, scoped, tag = 'input window, operand 7, single buffered']
    #allocation8 [shape = 'u8[131072]{0}', space=vmem, size = 0x20000, scoped, tag = 'input window, operand 9, single buffered']
    #allocation9 [shape = 's32[1]{0}', space=sflag, size = 0x4, scoped, tag = 'scoped memory for conv1d_model_forward.1']
    #allocation10 [shape = 'u8[1024]{0}', space=vmem, size = 0x400, scoped, tag = 'output window, operand 0']
    %16 = vsyncpa [#allocation3], 0
    %17 = vsyncpa [#allocation6], 0
    %18 = vsyncpa [#allocation9], 0
    %19 = vsyncpa [#allocation4], 0
    %s20 = scalar_lea.sflag [#allocation4], 1
    %21 = vsyncpa %s20, 0
    loop: start=0, step=1, limit=4
    $region2: #{conv1d_model_forward.1} parent=1 // loop_pre_header
      _
    $region3: #{conv1d_model_forward.1} parent=1 // loop_header
      %s23 = sphi 0, %s27
      %p24 = scmp.ge.s32.totalorder %s23, 4
      %s33 = sphi 0, %s35
      %s36 = sphi 0, %s33
      %s37 = sphi 0, %s36
      %s53 = sphi 0, %s37
      %s57 = sphi 0, %s57
      %s59 = sphi 0, %s57
      %s60 = sphi 0, %s59
      %s74 = sphi 0, %s60
      %s78 = sphi 0, %s78
      %s80 = sphi 0, %s78
      %s81 = sphi 0, %s80
      %s95 = sphi 0, %s81
      %s99 = sphi 0, %s99
      %s101 = sphi 0, %s99
      %s102 = sphi 0, %s101
      %s116 = sphi 0, %s102
      %s120 = sphi 0, %s120
      %s122 = sphi 0, %s120
      %s123 = sphi 0, %s122
      %s137 = sphi 0, %s123
      %s141 = sphi 0, %s141
      %s143 = sphi 0, %s141
      %s144 = sphi 0, %s143
      %s158 = sphi 0, %s144
      %s162 = sphi 0, %s162
      %s164 = sphi 0, %s162
      %s165 = sphi 0, %s164
      %s179 = sphi 0, %s165
      %s183 = sphi 0, %s183
      %s185 = sphi 0, %s183
      %s186 = sphi 0, %s185
      %s200 = sphi 0, %s186
      %s204 = sphi 0, %s204
      %s206 = sphi 0, %s204
      %s207 = sphi 0, %s206
      %s221 = sphi 0, %s207
      %s225 = sphi 0, %s225
      %s227 = sphi 0, %s225
      %s228 = sphi 0, %s227
      %s242 = sphi 0, %s228
      %s246 = sphi 0, %s246
      %s248 = sphi 0, %s246
      %s249 = sphi 0, %s248
      %s263 = sphi 0, %s249
      %s269 = sphi 0, %s271
      %s272 = sphi 0, %s269
      %s273 = sphi 0, %s272
      %s289 = sphi 0, %s273
    $region4: #{conv1d_model_forward.1} parent=1 // loop_header_branch
      %26 = sbr.rel (%p24) target = $region8
    $region5: #{conv1d_model_forward.1} parent=1 // loop_body
      %s28 = ssub.s32 %s23, 1
      %s29 = ssub.s32 %s23, 2
      %s30 = sadd.s32 %s23, 1
      %s31 = ssub.s32 %s23, %s30
      %p32 = scmp.eq.s32.totalorder %s31, 0
      %s34 = sadd.s32 %s33, 1
      %s35 = scalar_select %p32, %s33, %s34
      %p38 = pneg %p32
      %p39 = scmp.eq.s32.totalorder %s23, 1
      %p40 = por %p38, %p39
      %p41 = scmp.ne.s32.totalorder %s33, %s36
      %p42 = scmp.eq.s32.totalorder %s23, 0
      %p43 = por %p41, %p42
      %p44 = scmp.ne.s32.totalorder %s33, %s36
      %p45 = scmp.eq.s32.totalorder %s28, 1
      %p46 = por %p44, %p45
      %p47 = scmp.ne.s32.totalorder %s36, %s37
      %p48 = scmp.eq.s32.totalorder %s28, 0
      %p49 = por %p47, %p48
      %p50 = scmp.ne.s32.totalorder %s36, %s37
      %p51 = scmp.eq.s32.totalorder %s29, 1
      %p52 = por %p50, %p51
      %p54 = scmp.ne.s32.totalorder %s37, %s53
      %p55 = scmp.eq.s32.totalorder %s29, 0
      %p56 = por %p54, %p55
      %s58 = sadd.s32 %s57, 1
      %p61 = scmp.eq.s32.totalorder %s23, 1
      %p62 = scmp.ne.s32.totalorder %s57, %s59
      %p63 = scmp.eq.s32.totalorder %s23, 0
      %p64 = por %p62, %p63
      %p65 = scmp.ne.s32.totalorder %s57, %s59
      %p66 = scmp.eq.s32.totalorder %s28, 1
      %p67 = por %p65, %p66
      %p68 = scmp.ne.s32.totalorder %s59, %s60
      %p69 = scmp.eq.s32.totalorder %s28, 0
      %p70 = por %p68, %p69
      %p71 = scmp.ne.s32.totalorder %s59, %s60
      %p72 = scmp.eq.s32.totalorder %s29, 1
      %p73 = por %p71, %p72
      %p75 = scmp.ne.s32.totalorder %s60, %s74
      %p76 = scmp.eq.s32.totalorder %s29, 0
      %p77 = por %p75, %p76
      %s79 = sadd.s32 %s78, 1
      %p82 = scmp.eq.s32.totalorder %s23, 1
      %p83 = scmp.ne.s32.totalorder %s78, %s80
      %p84 = scmp.eq.s32.totalorder %s23, 0
      %p85 = por %p83, %p84
      %p86 = scmp.ne.s32.totalorder %s78, %s80
      %p87 = scmp.eq.s32.totalorder %s28, 1
      %p88 = por %p86, %p87
      %p89 = scmp.ne.s32.totalorder %s80, %s81
      %p90 = scmp.eq.s32.totalorder %s28, 0
      %p91 = por %p89, %p90
      %p92 = scmp.ne.s32.totalorder %s80, %s81
      %p93 = scmp.eq.s32.totalorder %s29, 1
      %p94 = por %p92, %p93
      %p96 = scmp.ne.s32.totalorder %s81, %s95
      %p97 = scmp.eq.s32.totalorder %s29, 0
      %p98 = por %p96, %p97
      %s100 = sadd.s32 %s99, 1
      %p103 = scmp.eq.s32.totalorder %s23, 1
      %p104 = scmp.ne.s32.totalorder %s99, %s101
      %p105 = scmp.eq.s32.totalorder %s23, 0
      %p106 = por %p104, %p105
      %p107 = scmp.ne.s32.totalorder %s99, %s101
      %p108 = scmp.eq.s32.totalorder %s28, 1
      %p109 = por %p107, %p108
      %p110 = scmp.ne.s32.totalorder %s101, %s102
      %p111 = scmp.eq.s32.totalorder %s28, 0
      %p112 = por %p110, %p111
      %p113 = scmp.ne.s32.totalorder %s101, %s102
      %p114 = scmp.eq.s32.totalorder %s29, 1
      %p115 = por %p113, %p114
      %p117 = scmp.ne.s32.totalorder %s102, %s116
      %p118 = scmp.eq.s32.totalorder %s29, 0
      %p119 = por %p117, %p118
      %s121 = sadd.s32 %s120, 1
      %p124 = scmp.eq.s32.totalorder %s23, 1
      %p125 = scmp.ne.s32.totalorder %s120, %s122
      %p126 = scmp.eq.s32.totalorder %s23, 0
      %p127 = por %p125, %p126
      %p128 = scmp.ne.s32.totalorder %s120, %s122
      %p129 = scmp.eq.s32.totalorder %s28, 1
      %p130 = por %p128, %p129
      %p131 = scmp.ne.s32.totalorder %s122, %s123
      %p132 = scmp.eq.s32.totalorder %s28, 0
      %p133 = por %p131, %p132
      %p134 = scmp.ne.s32.totalorder %s122, %s123
      %p135 = scmp.eq.s32.totalorder %s29, 1
      %p136 = por %p134, %p135
      %p138 = scmp.ne.s32.totalorder %s123, %s137
      %p139 = scmp.eq.s32.totalorder %s29, 0
      %p140 = por %p138, %p139
      %s142 = sadd.s32 %s141, 1
      %p145 = scmp.eq.s32.totalorder %s23, 1
      %p146 = scmp.ne.s32.totalorder %s141, %s143
      %p147 = scmp.eq.s32.totalorder %s23, 0
      %p148 = por %p146, %p147
      %p149 = scmp.ne.s32.totalorder %s141, %s143
      %p150 = scmp.eq.s32.totalorder %s28, 1
      %p151 = por %p149, %p150
      %p152 = scmp.ne.s32.totalorder %s143, %s144
      %p153 = scmp.eq.s32.totalorder %s28, 0
      %p154 = por %p152, %p153
      %p155 = scmp.ne.s32.totalorder %s143, %s144
      %p156 = scmp.eq.s32.totalorder %s29, 1
      %p157 = por %p155, %p156
      %p159 = scmp.ne.s32.totalorder %s144, %s158
      %p160 = scmp.eq.s32.totalorder %s29, 0
      %p161 = por %p159, %p160
      %s163 = sadd.s32 %s162, 1
      %p166 = scmp.eq.s32.totalorder %s23, 1
      %p167 = scmp.ne.s32.totalorder %s162, %s164
      %p168 = scmp.eq.s32.totalorder %s23, 0
      %p169 = por %p167, %p168
      %p170 = scmp.ne.s32.totalorder %s162, %s164
      %p171 = scmp.eq.s32.totalorder %s28, 1
      %p172 = por %p170, %p171
      %p173 = scmp.ne.s32.totalorder %s164, %s165
      %p174 = scmp.eq.s32.totalorder %s28, 0
      %p175 = por %p173, %p174
      %p176 = scmp.ne.s32.totalorder %s164, %s165
      %p177 = scmp.eq.s32.totalorder %s29, 1
      %p178 = por %p176, %p177
      %p180 = scmp.ne.s32.totalorder %s165, %s179
      %p181 = scmp.eq.s32.totalorder %s29, 0
      %p182 = por %p180, %p181
      %s184 = sadd.s32 %s183, 1
      %p187 = scmp.eq.s32.totalorder %s23, 1
      %p188 = scmp.ne.s32.totalorder %s183, %s185
      %p189 = scmp.eq.s32.totalorder %s23, 0
      %p190 = por %p188, %p189
      %p191 = scmp.ne.s32.totalorder %s183, %s185
      %p192 = scmp.eq.s32.totalorder %s28, 1
      %p193 = por %p191, %p192
      %p194 = scmp.ne.s32.totalorder %s185, %s186
      %p195 = scmp.eq.s32.totalorder %s28, 0
      %p196 = por %p194, %p195
      %p197 = scmp.ne.s32.totalorder %s185, %s186
      %p198 = scmp.eq.s32.totalorder %s29, 1
      %p199 = por %p197, %p198
      %p201 = scmp.ne.s32.totalorder %s186, %s200
      %p202 = scmp.eq.s32.totalorder %s29, 0
      %p203 = por %p201, %p202
      %s205 = sadd.s32 %s204, 1
      %p208 = scmp.eq.s32.totalorder %s23, 1
      %p209 = scmp.ne.s32.totalorder %s204, %s206
      %p210 = scmp.eq.s32.totalorder %s23, 0
      %p211 = por %p209, %p210
      %p212 = scmp.ne.s32.totalorder %s204, %s206
      %p213 = scmp.eq.s32.totalorder %s28, 1
      %p214 = por %p212, %p213
      %p215 = scmp.ne.s32.totalorder %s206, %s207
      %p216 = scmp.eq.s32.totalorder %s28, 0
      %p217 = por %p215, %p216
      %p218 = scmp.ne.s32.totalorder %s206, %s207
      %p219 = scmp.eq.s32.totalorder %s29, 1
      %p220 = por %p218, %p219
      %p222 = scmp.ne.s32.totalorder %s207, %s221
      %p223 = scmp.eq.s32.totalorder %s29, 0
      %p224 = por %p222, %p223
      %s226 = sadd.s32 %s225, 1
      %p229 = scmp.eq.s32.totalorder %s23, 1
      %p230 = scmp.ne.s32.totalorder %s225, %s227
      %p231 = scmp.eq.s32.totalorder %s23, 0
      %p232 = por %p230, %p231
      %p233 = scmp.ne.s32.totalorder %s225, %s227
      %p234 = scmp.eq.s32.totalorder %s28, 1
      %p235 = por %p233, %p234
      %p236 = scmp.ne.s32.totalorder %s227, %s228
      %p237 = scmp.eq.s32.totalorder %s28, 0
      %p238 = por %p236, %p237
      %p239 = scmp.ne.s32.totalorder %s227, %s228
      %p240 = scmp.eq.s32.totalorder %s29, 1
      %p241 = por %p239, %p240
      %p243 = scmp.ne.s32.totalorder %s228, %s242
      %p244 = scmp.eq.s32.totalorder %s29, 0
      %p245 = por %p243, %p244
      %s247 = sadd.s32 %s246, 1
      %p250 = scmp.eq.s32.totalorder %s23, 1
      %p251 = scmp.ne.s32.totalorder %s246, %s248
      %p252 = scmp.eq.s32.totalorder %s23, 0
      %p253 = por %p251, %p252
      %p254 = scmp.ne.s32.totalorder %s246, %s248
      %p255 = scmp.eq.s32.totalorder %s28, 1
      %p256 = por %p254, %p255
      %p257 = scmp.ne.s32.totalorder %s248, %s249
      %p258 = scmp.eq.s32.totalorder %s28, 0
      %p259 = por %p257, %p258
      %p260 = scmp.ne.s32.totalorder %s248, %s249
      %p261 = scmp.eq.s32.totalorder %s29, 1
      %p262 = por %p260, %p261
      %p264 = scmp.ne.s32.totalorder %s249, %s263
      %p265 = scmp.eq.s32.totalorder %s29, 0
      %p266 = por %p264, %p265
      %s267 = ssub.s32 %s23, %s30
      %p268 = scmp.eq.s32.totalorder %s267, 0
      %s270 = sadd.s32 %s269, 1
      %s271 = scalar_select %p268, %s269, %s270
      %p274 = pneg %p268
      %p275 = scmp.eq.s32.totalorder %s23, 1
      %p276 = por %p274, %p275
      %p277 = scmp.ne.s32.totalorder %s269, %s272
      %p278 = scmp.eq.s32.totalorder %s23, 0
      %p279 = por %p277, %p278
      %p280 = scmp.ne.s32.totalorder %s269, %s272
      %p281 = scmp.eq.s32.totalorder %s28, 1
      %p282 = por %p280, %p281
      %p283 = scmp.ne.s32.totalorder %s272, %s273
      %p284 = scmp.eq.s32.totalorder %s28, 0
      %p285 = por %p283, %p284
      %p286 = scmp.ne.s32.totalorder %s272, %s273
      %p287 = scmp.eq.s32.totalorder %s29, 1
      %p288 = por %p286, %p287
      %p290 = scmp.ne.s32.totalorder %s273, %s289
      %p291 = scmp.eq.s32.totalorder %s29, 0
      %p292 = por %p290, %p291
      %p293 = scmp.le.s32.totalorder 1, %s23
      %p294 = scmp.lt.s32.totalorder %s23, 3
      %p295 = pnand %p293, %p294
      %p296 = pneg %p295
      // Predicated region
      $region9: #{conv1d_model_forward.1} parent=5 // pred_check
        _
      $region10: #{conv1d_model_forward.1} parent=5 // pred_check_branch
        %298 = sbr.rel (%p295) target = $region12
      $region11: #{conv1d_model_forward.1} parent=5 // pred_region
        %s299 = ssub.s32 %s23, 1
        // Predicated region
        $region13: #{conv1d_model_forward.1} parent=11 // pred_check
          %p300 = pneg %p70
        $region14: #{conv1d_model_forward.1} parent=11 // pred_check_branch
          %302 = sbr.rel (%p300) target = $region16
        $region15: #{conv1d_model_forward.1} parent=11 // pred_region
          _
        $region16: #{conv1d_model_forward.1} parent=11 // pred_fallthru
          _
        // Predicated region
        $region17: #{conv1d_model_forward.1} parent=11 // pred_check
          %p303 = pneg %p91
        $region18: #{conv1d_model_forward.1} parent=11 // pred_check_branch
          %305 = sbr.rel (%p303) target = $region20
        $region19: #{conv1d_model_forward.1} parent=11 // pred_region
          _
        $region20: #{conv1d_model_forward.1} parent=11 // pred_fallthru
          _
        // Predicated region
        $region21: #{conv1d_model_forward.1} parent=11 // pred_check
          %p306 = pneg %p112
        $region22: #{conv1d_model_forward.1} parent=11 // pred_check_branch
          %308 = sbr.rel (%p306) target = $region24
        $region23: #{conv1d_model_forward.1} parent=11 // pred_region
          %s310 = ssub.s32 20480, 20480
          %311 = vsyncadd [#allocation3], %s310
          %s312 = sshll.u32 [#allocation2], 4
          %s313 = int_to_ptr.vmem [resolvable:$true] %s312
          %318 = dma.hbm_to_vmem [thread:$0]  %s3, 20480, %s313, [#allocation3], 128, 128, 8
        $region24: #{conv1d_model_forward.1} parent=11 // pred_fallthru
          _
        // Predicated region
        $region25: #{conv1d_model_forward.1} parent=11 // pred_check
          %p319 = pneg %p133
        $region26: #{conv1d_model_forward.1} parent=11 // pred_check_branch
          %321 = sbr.rel (%p319) target = $region28
        $region27: #{conv1d_model_forward.1} parent=11 // pred_region
          _
        $region28: #{conv1d_model_forward.1} parent=11 // pred_fallthru
          _
        // Predicated region
        $region29: #{conv1d_model_forward.1} parent=11 // pred_check
          %p322 = pneg %p154
        $region30: #{conv1d_model_forward.1} parent=11 // pred_check_branch
          %324 = sbr.rel (%p322) target = $region32
        $region31: #{conv1d_model_forward.1} parent=11 // pred_region
          %s326 = ssub.s32 10240, 10240
          %327 = vsyncadd [#allocation6], %s326
          %s328 = sshll.u32 [#allocation5], 4
          %s329 = int_to_ptr.vmem [resolvable:$true] %s328
          %334 = dma.hbm_to_vmem [thread:$0]  %s5, 10240, %s329, [#allocation6], 128, 128, 8
        $region32: #{conv1d_model_forward.1} parent=11 // pred_fallthru
          _
        // Predicated region
        $region33: #{conv1d_model_forward.1} parent=11 // pred_check
          %p335 = pneg %p175
        $region34: #{conv1d_model_forward.1} parent=11 // pred_check_branch
          %337 = sbr.rel (%p335) target = $region36
        $region35: #{conv1d_model_forward.1} parent=11 // pred_region
          _
        $region36: #{conv1d_model_forward.1} parent=11 // pred_fallthru
          _
        // Predicated region
        $region37: #{conv1d_model_forward.1} parent=11 // pred_check
          %p338 = pneg %p196
        $region38: #{conv1d_model_forward.1} parent=11 // pred_check_branch
          %340 = sbr.rel (%p338) target = $region40
        $region39: #{conv1d_model_forward.1} parent=11 // pred_region
          %s342 = ssub.s32 10240, 10240
          %343 = vsyncadd [#allocation6], %s342
          %s344 = sshll.u32 [#allocation7], 4
          %s345 = int_to_ptr.vmem [resolvable:$true] %s344
          %350 = dma.hbm_to_vmem [thread:$0]  %s7, 10240, %s345, [#allocation6], 128, 128, 8
        $region40: #{conv1d_model_forward.1} parent=11 // pred_fallthru
          _
        // Predicated region
        $region41: #{conv1d_model_forward.1} parent=11 // pred_check
          %p351 = pneg %p217
        $region42: #{conv1d_model_forward.1} parent=11 // pred_check_branch
          %353 = sbr.rel (%p351) target = $region44
        $region43: #{conv1d_model_forward.1} parent=11 // pred_region
          _
        $region44: #{conv1d_model_forward.1} parent=11 // pred_fallthru
          _
        // Predicated region
        $region45: #{conv1d_model_forward.1} parent=11 // pred_check
          %p354 = pneg %p238
        $region46: #{conv1d_model_forward.1} parent=11 // pred_check_branch
          %356 = sbr.rel (%p354) target = $region48
        $region47: #{conv1d_model_forward.1} parent=11 // pred_region
          %s358 = ssub.s32 4096, 4096
          %359 = vsyncadd [#allocation9], %s358
          %s360 = sshll.u32 [#allocation8], 4
          %s361 = int_to_ptr.vmem [resolvable:$true] %s360
          %366 = dma.hbm_to_vmem [thread:$0]  %s9, 4096, %s361, [#allocation9], 128, 128, 8
        $region48: #{conv1d_model_forward.1} parent=11 // pred_fallthru
          _
        // Predicated region
        $region49: #{conv1d_model_forward.1} parent=11 // pred_check
          %p367 = pneg %p259
        $region50: #{conv1d_model_forward.1} parent=11 // pred_check_branch
          %369 = sbr.rel (%p367) target = $region52
        $region51: #{conv1d_model_forward.1} parent=11 // pred_region
          _
        $region52: #{conv1d_model_forward.1} parent=11 // pred_fallthru
          _
      $region12: #{conv1d_model_forward.1} parent=5 // pred_fallthru
        _
      %p370 = scmp.lt.s32.totalorder %s23, 2
      // Predicated region
      $region53: #{conv1d_model_forward.1} parent=5 // pred_check
        %p371 = pneg %p370
      $region54: #{conv1d_model_forward.1} parent=5 // pred_check_branch
        %373 = sbr.rel (%p371) target = $region56
      $region55: #{conv1d_model_forward.1} parent=5 // pred_region
        // Predicated region
        $region57: #{conv1d_model_forward.1} parent=55 // pred_check
          %p374 = pneg %p43
        $region58: #{conv1d_model_forward.1} parent=55 // pred_check_branch
          %376 = sbr.rel (%p374) target = $region60
        $region59: #{conv1d_model_forward.1} parent=55 // pred_region
          %p377 = scmp.lt.s32.totalorder %s23, 1
          %s378 = scalar_select %p377, %s23, 1
          %s379 = smul.addr %s378, 2
          %s380 = smul.addr %s379, 8
          %s381 = scalar_lea.vmem %s0, %s380
        $region60: #{conv1d_model_forward.1} parent=55 // pred_fallthru
          _
      $region56: #{conv1d_model_forward.1} parent=5 // pred_fallthru
        _
      %p382 = scmp.le.s32.totalorder 1, %s23
      %p383 = scmp.lt.s32.totalorder %s23, 3
      %p384 = pnand %p382, %p383
      %p385 = pneg %p384
      // Predicated region
      $region61: #{conv1d_model_forward.1} parent=5 // pred_check
        _
      $region62: #{conv1d_model_forward.1} parent=5 // pred_check_branch
        %387 = sbr.rel (%p384) target = $region64
      $region63: #{conv1d_model_forward.1} parent=5 // pred_region
        %s388 = ssub.s32 %s23, 1
        // Predicated region
        $region65: #{conv1d_model_forward.1} parent=63 // pred_check
          %p389 = pneg %p112
        $region66: #{conv1d_model_forward.1} parent=63 // pred_check_branch
          %391 = sbr.rel (%p389) target = $region68
        $region67: #{conv1d_model_forward.1} parent=63 // pred_region
          %392 = dma.done [#allocation3], 20480
        $region68: #{conv1d_model_forward.1} parent=63 // pred_fallthru
          _
        // Predicated region
        $region69: #{conv1d_model_forward.1} parent=63 // pred_check
          %p393 = pneg %p154
        $region70: #{conv1d_model_forward.1} parent=63 // pred_check_branch
          %395 = sbr.rel (%p393) target = $region72
        $region71: #{conv1d_model_forward.1} parent=63 // pred_region
          %396 = dma.done [#allocation6], 10240
        $region72: #{conv1d_model_forward.1} parent=63 // pred_fallthru
          _
        // Predicated region
        $region73: #{conv1d_model_forward.1} parent=63 // pred_check
          %p397 = pneg %p196
        $region74: #{conv1d_model_forward.1} parent=63 // pred_check_branch
          %399 = sbr.rel (%p397) target = $region76
        $region75: #{conv1d_model_forward.1} parent=63 // pred_region
          %400 = dma.done [#allocation6], 10240
        $region76: #{conv1d_model_forward.1} parent=63 // pred_fallthru
          _
        // Predicated region
        $region77: #{conv1d_model_forward.1} parent=63 // pred_check
          %p401 = pneg %p238
        $region78: #{conv1d_model_forward.1} parent=63 // pred_check_branch
          %403 = sbr.rel (%p401) target = $region80
        $region79: #{conv1d_model_forward.1} parent=63 // pred_region
          %404 = dma.done [#allocation9], 4096
        $region80: #{conv1d_model_forward.1} parent=63 // pred_fallthru
          _
        %p405 = scmp.lt.s32.totalorder %s28, 1
        %s406 = scalar_select %p405, %s28, 1
        %s407 = smul.addr %s406, 2
        %s408 = smul.addr %s407, 8
        %s409 = scalar_lea.vmem %s0, %s408
        %p410 = pneg %p49
        %p411 = pneg %p46
        %p412 = pneg %p70
        %p413 = pneg %p67
        %p414 = pneg %p91
        %p415 = pneg %p88
        %p416 = pneg %p112
        %p417 = pneg %p109
        %p418 = pneg %p133
        %p419 = pneg %p130
        %p420 = pneg %p154
        %p421 = pneg %p151
        %p422 = pneg %p175
        %p423 = pneg %p172
        %p424 = pneg %p196
        %p425 = pneg %p193
        %p426 = pneg %p217
        %p427 = pneg %p214
        %p428 = pneg %p238
        %p429 = pneg %p235
        %p430 = pneg %p259
        %p431 = pneg %p256
        %p432 = pneg %p285
        %p433 = pneg %p282
        %s434 = sand.u32 %s272, 1
        %s435 = scalar_lea.sflag [#allocation4], %s434
        %s436 = sand.u32 %s272, 1
        %s437 = scalar_lea.vmem [#allocation10], %s436
        %p438 = scmp.lt.s32.totalorder %s28, 1
        %s439 = scalar_select %p438, %s28, 1
        %s440 = smul.addr %s439, 2
        %s441 = smul.addr %s440, 8
        %s442 = scalar_lea.vmem %s0, %s441
        %v443 = vld [vmem:[%s442] sm:$0xff]
        %v444 = vld [vmem:[%s442 + $0x8] sm:$0xff]
        %v445 = vld [vmem:[%s1] sm:$0xff]
        %v446 = vld [vmem:[%s1 + $0x8] sm:$0xff]
        %vm449 = vcmask 1041408
        %v450 = vrot.slane %v443, 6
        %v451 = vrot.slane %v444, 6
        %v452 = vsel %vm449, %v450, %v451
        %v455 = vsel %vm449, 0.0, %v450
        %v456 = vsel %vm449, %v451, 0.0
        %458 = vset.pattern.permute.xlu0 0
        %459 = vperm.xlu0 %458, %v455
        %v460 = vpop.permute.xlu0 %459
        %462 = vset.pattern.permute.xlu0 0
        %463 = vperm.xlu0 %462, %v452
        %v464 = vpop.permute.xlu0 %463
        %v466 = vlaneseq
        %v467 = vshrl.u32 %v466, 7
        %v468 = vsub.s32 0, %v467
        %v469 = vrot.slane %v445, %v468
        %v470 = vlaneseq
        %v471 = vshrl.u32 %v470, 7
        %v472 = vsub.s32 0, %v471
        %v473 = vrot.slane %v446, %v472
        %v474 = vmul.f32 %v460, %v469
        %v475 = vmul.f32 %v460, %v473
        %v476 = vmul.f32 %v464, %v469
        %v477 = vmul.f32 %v464, %v473
        %v478 = vadd.f32 %v474, 0.0
        %v479 = vadd.f32 %v475, 0.0
        %v480 = vadd.f32 %v476, 0.0
        %v481 = vadd.f32 %v477, 0.0
        %483 = vset.pattern.permute.xlu0 0
        %484 = vperm.xlu0 %483, %v456
        %v485 = vpop.permute.xlu0 %484
        %v487 = vlaneseq
        %v488 = vshrl.u32 %v487, 7
        %v489 = vsub.s32 1, %v488
        %v490 = vrot.slane %v445, %v489
        %v491 = vlaneseq
        %v492 = vshrl.u32 %v491, 7
        %v493 = vsub.s32 1, %v492
        %v494 = vrot.slane %v446, %v493
        %v495 = vmul.f32 %v460, %v490
        %v496 = vmul.f32 %v460, %v494
        %v497 = vmul.f32 %v464, %v490
        %v498 = vmul.f32 %v464, %v494
        %v499 = vmul.f32 %v485, %v490
        %v500 = vmul.f32 %v485, %v494
        %vm507 = vcmask 1046528
        %v508 = vrot.slane %v495, 1
        %v509 = vrot.slane %v497, 1
        %v510 = vsel %vm507, %v508, %v509
        %v511 = vrot.slane %v496, 1
        %v512 = vrot.slane %v498, 1
        %v513 = vsel %vm507, %v511, %v512
        %v514 = vrot.slane %v499, 1
        %v515 = vsel %vm507, %v509, %v514
        %v516 = vrot.slane %v500, 1
        %v517 = vsel %vm507, %v512, %v516
        %v522 = vadd.f32 %v478, %v510
        %v523 = vadd.f32 %v479, %v513
        %v524 = vadd.f32 %v480, %v515
        %v525 = vadd.f32 %v481, %v517
        %v526 = vlaneseq
        %v527 = vshrl.u32 %v526, 7
        %v528 = vsub.s32 2, %v527
        %v529 = vrot.slane %v445, %v528
        %v530 = vlaneseq
        %v531 = vshrl.u32 %v530, 7
        %v532 = vsub.s32 2, %v531
        %v533 = vrot.slane %v446, %v532
        %v534 = vmul.f32 %v460, %v529
        %v535 = vmul.f32 %v460, %v533
        %v536 = vmul.f32 %v464, %v529
        %v537 = vmul.f32 %v464, %v533
        %v538 = vmul.f32 %v485, %v529
        %v539 = vmul.f32 %v485, %v533
        %vm546 = vcmask 1045504
        %v547 = vrot.slane %v534, 2
        %v548 = vrot.slane %v536, 2
        %v549 = vsel %vm546, %v547, %v548
        %v550 = vrot.slane %v535, 2
        %v551 = vrot.slane %v537, 2
        %v552 = vsel %vm546, %v550, %v551
        %v553 = vrot.slane %v538, 2
        %v554 = vsel %vm546, %v548, %v553
        %v555 = vrot.slane %v539, 2
        %v556 = vsel %vm546, %v551, %v555
        %v561 = vadd.f32 %v522, %v549
        %v562 = vadd.f32 %v523, %v552
        %v563 = vadd.f32 %v524, %v554
        %v564 = vadd.f32 %v525, %v556
        %v565 = vlaneseq
        %v566 = vshrl.u32 %v565, 7
        %v567 = vsub.s32 3, %v566
        %v568 = vrot.slane %v445, %v567
        %v569 = vlaneseq
        %v570 = vshrl.u32 %v569, 7
        %v571 = vsub.s32 3, %v570
        %v572 = vrot.slane %v446, %v571
        %v573 = vmul.f32 %v460, %v568
        %v574 = vmul.f32 %v460, %v572
        %v575 = vmul.f32 %v464, %v568
        %v576 = vmul.f32 %v464, %v572
        %v577 = vmul.f32 %v485, %v568
        %v578 = vmul.f32 %v485, %v572
        %vm585 = vcmask 1044480
        %v586 = vrot.slane %v573, 3
        %v587 = vrot.slane %v575, 3
        %v588 = vsel %vm585, %v586, %v587
        %v589 = vrot.slane %v574, 3
        %v590 = vrot.slane %v576, 3
        %v591 = vsel %vm585, %v589, %v590
        %v592 = vrot.slane %v577, 3
        %v593 = vsel %vm585, %v587, %v592
        %v594 = vrot.slane %v578, 3
        %v595 = vsel %vm585, %v590, %v594
        %v600 = vadd.f32 %v561, %v588
        %v601 = vadd.f32 %v562, %v591
        %v602 = vadd.f32 %v563, %v593
        %v603 = vadd.f32 %v564, %v595
        %v604 = vlaneseq
        %v605 = vshrl.u32 %v604, 7
        %v606 = vsub.s32 4, %v605
        %v607 = vrot.slane %v445, %v606
        %v608 = vlaneseq
        %v609 = vshrl.u32 %v608, 7
        %v610 = vsub.s32 4, %v609
        %v611 = vrot.slane %v446, %v610
        %v612 = vmul.f32 %v460, %v607
        %v613 = vmul.f32 %v460, %v611
        %v614 = vmul.f32 %v464, %v607
        %v615 = vmul.f32 %v464, %v611
        %v616 = vmul.f32 %v485, %v607
        %v617 = vmul.f32 %v485, %v611
        %vm624 = vcmask 1043456
        %v625 = vrot.slane %v612, 4
        %v626 = vrot.slane %v614, 4
        %v627 = vsel %vm624, %v625, %v626
        %v628 = vrot.slane %v613, 4
        %v629 = vrot.slane %v615, 4
        %v630 = vsel %vm624, %v628, %v629
        %v631 = vrot.slane %v616, 4
        %v632 = vsel %vm624, %v626, %v631
        %v633 = vrot.slane %v617, 4
        %v634 = vsel %vm624, %v629, %v633
        %v639 = vadd.f32 %v600, %v627
        %v640 = vadd.f32 %v601, %v630
        %v641 = vadd.f32 %v602, %v632
        %v642 = vadd.f32 %v603, %v634
        %v643 = vld [vmem:[%s2] sm:$0x3]
        %v645 = vlaneseq
        %v646 = vshrl.u32 %v645, 7
        %v647 = vsub.s32 0, %v646
        %v648 = vrot.slane %v643, %v647
        %v649 = vlaneseq
        %v650 = vshrl.u32 %v649, 7
        %v651 = vsub.s32 1, %v650
        %v652 = vrot.slane %v643, %v651
        %v655 = vadd.f32 %v639, %v648
        %v656 = vadd.f32 %v640, %v652
        %v657 = vadd.f32 %v641, %v648
        %v658 = vadd.f32 %v642, %v652
        %v659 = vmax.f32 %v655, 0.0
        %v660 = vmax.f32 %v656, 0.0
        %v661 = vmax.f32 %v657, 0.0
        %v662 = vmax.f32 %v658, 0.0
        %v663 = vld [vmem:[#allocation2] sm:$0xff]
        %v664 = vld [vmem:[#allocation2 + $0x8] sm:$0xff]
        %v665 = vld [vmem:[#allocation2 + $0x10] sm:$0xff]
        %v666 = vld [vmem:[#allocation2 + $0x18] sm:$0xff]
        %v667 = vld [vmem:[#allocation2 + $0x20] sm:$0xff]
        %v668 = vld [vmem:[#allocation2 + $0x28] sm:$0xff]
        %v669 = vld [vmem:[#allocation2 + $0x30] sm:$0xff]
        %v670 = vld [vmem:[#allocation2 + $0x38] sm:$0xff]
        %v671 = vld [vmem:[#allocation2 + $0x40] sm:$0xff]
        %v672 = vld [vmem:[#allocation2 + $0x48] sm:$0xff]
        %v673 = vld [vmem:[#allocation2 + $0x50] sm:$0xff]
        %v674 = vld [vmem:[#allocation2 + $0x58] sm:$0xff]
        %v675 = vld [vmem:[#allocation2 + $0x60] sm:$0xff]
        %v676 = vld [vmem:[#allocation2 + $0x68] sm:$0xff]
        %v677 = vld [vmem:[#allocation2 + $0x70] sm:$0xff]
        %v678 = vld [vmem:[#allocation2 + $0x78] sm:$0xff]
        %v679 = vld [vmem:[#allocation2 + $0x80] sm:$0xff]
        %v680 = vld [vmem:[#allocation2 + $0x88] sm:$0xff]
        %v681 = vld [vmem:[#allocation2 + $0x90] sm:$0xff]
        %v682 = vld [vmem:[#allocation2 + $0x98] sm:$0xff]
        %v683 = vld [vmem:[#allocation2 + $0xa0] sm:$0xff]
        %v684 = vld [vmem:[#allocation2 + $0xa8] sm:$0xff]
        %v685 = vld [vmem:[#allocation2 + $0xb0] sm:$0xff]
        %v686 = vld [vmem:[#allocation2 + $0xb8] sm:$0xff]
        %v687 = vld [vmem:[#allocation2 + $0xc0] sm:$0xff]
        %v688 = vld [vmem:[#allocation2 + $0xc8] sm:$0xff]
        %v689 = vld [vmem:[#allocation2 + $0xd0] sm:$0xff]
        %v690 = vld [vmem:[#allocation2 + $0xd8] sm:$0xff]
        %v691 = vld [vmem:[#allocation2 + $0xe0] sm:$0xff]
        %v692 = vld [vmem:[#allocation2 + $0xe8] sm:$0xff]
        %v693 = vld [vmem:[#allocation2 + $0xf0] sm:$0xff]
        %v694 = vld [vmem:[#allocation2 + $0xf8] sm:$0xff]
        %v695 = vld [vmem:[#allocation2 + $0x100] sm:$0xff]
        %v696 = vld [vmem:[#allocation2 + $0x108] sm:$0xff]
        %v697 = vld [vmem:[#allocation2 + $0x110] sm:$0xff]
        %v698 = vld [vmem:[#allocation2 + $0x118] sm:$0xff]
        %v699 = vld [vmem:[#allocation2 + $0x120] sm:$0xff]
        %v700 = vld [vmem:[#allocation2 + $0x128] sm:$0xff]
        %v701 = vld [vmem:[#allocation2 + $0x130] sm:$0xff]
        %v702 = vld [vmem:[#allocation2 + $0x138] sm:$0xff]
        %v703 = vld [vmem:[#allocation2 + $0x140] sm:$0xff]
        %v704 = vld [vmem:[#allocation2 + $0x148] sm:$0xff]
        %v705 = vld [vmem:[#allocation2 + $0x150] sm:$0xff]
        %v706 = vld [vmem:[#allocation2 + $0x158] sm:$0xff]
        %v707 = vld [vmem:[#allocation2 + $0x160] sm:$0xff]
        %v708 = vld [vmem:[#allocation2 + $0x168] sm:$0xff]
        %v709 = vld [vmem:[#allocation2 + $0x170] sm:$0xff]
        %v710 = vld [vmem:[#allocation2 + $0x178] sm:$0xff]
        %v711 = vld [vmem:[#allocation2 + $0x180] sm:$0xff]
        %v712 = vld [vmem:[#allocation2 + $0x188] sm:$0xff]
        %v713 = vld [vmem:[#allocation2 + $0x190] sm:$0xff]
        %v714 = vld [vmem:[#allocation2 + $0x198] sm:$0xff]
        %v715 = vld [vmem:[#allocation2 + $0x1a0] sm:$0xff]
        %v716 = vld [vmem:[#allocation2 + $0x1a8] sm:$0xff]
        %v717 = vld [vmem:[#allocation2 + $0x1b0] sm:$0xff]
        %v718 = vld [vmem:[#allocation2 + $0x1b8] sm:$0xff]
        %v719 = vld [vmem:[#allocation2 + $0x1c0] sm:$0xff]
        %v720 = vld [vmem:[#allocation2 + $0x1c8] sm:$0xff]
        %v721 = vld [vmem:[#allocation2 + $0x1d0] sm:$0xff]
        %v722 = vld [vmem:[#allocation2 + $0x1d8] sm:$0xff]
        %v723 = vld [vmem:[#allocation2 + $0x1e0] sm:$0xff]
        %v724 = vld [vmem:[#allocation2 + $0x1e8] sm:$0xff]
        %v725 = vld [vmem:[#allocation2 + $0x1f0] sm:$0xff]
        %v726 = vld [vmem:[#allocation2 + $0x1f8] sm:$0xff]
        %v727 = vld [vmem:[#allocation2 + $0x200] sm:$0xff]
        %v728 = vld [vmem:[#allocation2 + $0x208] sm:$0xff]
        %v729 = vld [vmem:[#allocation2 + $0x210] sm:$0xff]
        %v730 = vld [vmem:[#allocation2 + $0x218] sm:$0xff]
        %v731 = vld [vmem:[#allocation2 + $0x220] sm:$0xff]
        %v732 = vld [vmem:[#allocation2 + $0x228] sm:$0xff]
        %v733 = vld [vmem:[#allocation2 + $0x230] sm:$0xff]
        %v734 = vld [vmem:[#allocation2 + $0x238] sm:$0xff]
        %v735 = vld [vmem:[#allocation2 + $0x240] sm:$0xff]
        %v736 = vld [vmem:[#allocation2 + $0x248] sm:$0xff]
        %v737 = vld [vmem:[#allocation2 + $0x250] sm:$0xff]
        %v738 = vld [vmem:[#allocation2 + $0x258] sm:$0xff]
        %v739 = vld [vmem:[#allocation2 + $0x260] sm:$0xff]
        %v740 = vld [vmem:[#allocation2 + $0x268] sm:$0xff]
        %v741 = vld [vmem:[#allocation2 + $0x270] sm:$0xff]
        %v742 = vld [vmem:[#allocation2 + $0x278] sm:$0xff]
        %v743 = vld [vmem:[#allocation2 + $0x280] sm:$0xff]
        %v744 = vld [vmem:[#allocation2 + $0x288] sm:$0xff]
        %v745 = vld [vmem:[#allocation2 + $0x290] sm:$0xff]
        %v746 = vld [vmem:[#allocation2 + $0x298] sm:$0xff]
        %v747 = vld [vmem:[#allocation2 + $0x2a0] sm:$0xff]
        %v748 = vld [vmem:[#allocation2 + $0x2a8] sm:$0xff]
        %v749 = vld [vmem:[#allocation2 + $0x2b0] sm:$0xff]
        %v750 = vld [vmem:[#allocation2 + $0x2b8] sm:$0xff]
        %v751 = vld [vmem:[#allocation2 + $0x2c0] sm:$0xff]
        %v752 = vld [vmem:[#allocation2 + $0x2c8] sm:$0xff]
        %v753 = vld [vmem:[#allocation2 + $0x2d0] sm:$0xff]
        %v754 = vld [vmem:[#allocation2 + $0x2d8] sm:$0xff]
        %v755 = vld [vmem:[#allocation2 + $0x2e0] sm:$0xff]
        %v756 = vld [vmem:[#allocation2 + $0x2e8] sm:$0xff]
        %v757 = vld [vmem:[#allocation2 + $0x2f0] sm:$0xff]
        %v758 = vld [vmem:[#allocation2 + $0x2f8] sm:$0xff]
        %v759 = vld [vmem:[#allocation2 + $0x300] sm:$0xff]
        %v760 = vld [vmem:[#allocation2 + $0x308] sm:$0xff]
        %v761 = vld [vmem:[#allocation2 + $0x310] sm:$0xff]
        %v762 = vld [vmem:[#allocation2 + $0x318] sm:$0xff]
        %v763 = vld [vmem:[#allocation2 + $0x320] sm:$0xff]
        %v764 = vld [vmem:[#allocation2 + $0x328] sm:$0xff]
        %v765 = vld [vmem:[#allocation2 + $0x330] sm:$0xff]
        %v766 = vld [vmem:[#allocation2 + $0x338] sm:$0xff]
        %v767 = vld [vmem:[#allocation2 + $0x340] sm:$0xff]
        %v768 = vld [vmem:[#allocation2 + $0x348] sm:$0xff]
        %v769 = vld [vmem:[#allocation2 + $0x350] sm:$0xff]
        %v770 = vld [vmem:[#allocation2 + $0x358] sm:$0xff]
        %v771 = vld [vmem:[#allocation2 + $0x360] sm:$0xff]
        %v772 = vld [vmem:[#allocation2 + $0x368] sm:$0xff]
        %v773 = vld [vmem:[#allocation2 + $0x370] sm:$0xff]
        %v774 = vld [vmem:[#allocation2 + $0x378] sm:$0xff]
        %v775 = vld [vmem:[#allocation2 + $0x380] sm:$0xff]
        %v776 = vld [vmem:[#allocation2 + $0x388] sm:$0xff]
        %v777 = vld [vmem:[#allocation2 + $0x390] sm:$0xff]
        %v778 = vld [vmem:[#allocation2 + $0x398] sm:$0xff]
        %v779 = vld [vmem:[#allocation2 + $0x3a0] sm:$0xff]
        %v780 = vld [vmem:[#allocation2 + $0x3a8] sm:$0xff]
        %v781 = vld [vmem:[#allocation2 + $0x3b0] sm:$0xff]
        %v782 = vld [vmem:[#allocation2 + $0x3b8] sm:$0xff]
        %v783 = vld [vmem:[#allocation2 + $0x3c0] sm:$0xff]
        %v784 = vld [vmem:[#allocation2 + $0x3c8] sm:$0xff]
        %v785 = vld [vmem:[#allocation2 + $0x3d0] sm:$0xff]
        %v786 = vld [vmem:[#allocation2 + $0x3d8] sm:$0xff]
        %v787 = vld [vmem:[#allocation2 + $0x3e0] sm:$0xff]
        %v788 = vld [vmem:[#allocation2 + $0x3e8] sm:$0xff]
        %v789 = vld [vmem:[#allocation2 + $0x3f0] sm:$0xff]
        %v790 = vld [vmem:[#allocation2 + $0x3f8] sm:$0xff]
        %v791 = vld [vmem:[#allocation2 + $0x400] sm:$0xff]
        %v792 = vld [vmem:[#allocation2 + $0x408] sm:$0xff]
        %v793 = vld [vmem:[#allocation2 + $0x410] sm:$0xff]
        %v794 = vld [vmem:[#allocation2 + $0x418] sm:$0xff]
        %v795 = vld [vmem:[#allocation2 + $0x420] sm:$0xff]
        %v796 = vld [vmem:[#allocation2 + $0x428] sm:$0xff]
        %v797 = vld [vmem:[#allocation2 + $0x430] sm:$0xff]
        %v798 = vld [vmem:[#allocation2 + $0x438] sm:$0xff]
        %v799 = vld [vmem:[#allocation2 + $0x440] sm:$0xff]
        %v800 = vld [vmem:[#allocation2 + $0x448] sm:$0xff]
        %v801 = vld [vmem:[#allocation2 + $0x450] sm:$0xff]
        %v802 = vld [vmem:[#allocation2 + $0x458] sm:$0xff]
        %v803 = vld [vmem:[#allocation2 + $0x460] sm:$0xff]
        %v804 = vld [vmem:[#allocation2 + $0x468] sm:$0xff]
        %v805 = vld [vmem:[#allocation2 + $0x470] sm:$0xff]
        %v806 = vld [vmem:[#allocation2 + $0x478] sm:$0xff]
        %v807 = vld [vmem:[#allocation2 + $0x480] sm:$0xff]
        %v808 = vld [vmem:[#allocation2 + $0x488] sm:$0xff]
        %v809 = vld [vmem:[#allocation2 + $0x490] sm:$0xff]
        %v810 = vld [vmem:[#allocation2 + $0x498] sm:$0xff]
        %v811 = vld [vmem:[#allocation2 + $0x4a0] sm:$0xff]
        %v812 = vld [vmem:[#allocation2 + $0x4a8] sm:$0xff]
        %v813 = vld [vmem:[#allocation2 + $0x4b0] sm:$0xff]
        %v814 = vld [vmem:[#allocation2 + $0x4b8] sm:$0xff]
        %v815 = vld [vmem:[#allocation2 + $0x4c0] sm:$0xff]
        %v816 = vld [vmem:[#allocation2 + $0x4c8] sm:$0xff]
        %v817 = vld [vmem:[#allocation2 + $0x4d0] sm:$0xff]
        %v818 = vld [vmem:[#allocation2 + $0x4d8] sm:$0xff]
        %v819 = vld [vmem:[#allocation2 + $0x4e0] sm:$0xff]
        %v820 = vld [vmem:[#allocation2 + $0x4e8] sm:$0xff]
        %v821 = vld [vmem:[#allocation2 + $0x4f0] sm:$0xff]
        %v822 = vld [vmem:[#allocation2 + $0x4f8] sm:$0xff]
        %v823 = vld [vmem:[%s4] sm:$0x1]
        %v828 = vrot.slane %v659, 6
        %v829 = vrot.slane %v660, 6
        %v830 = vrot.slane %v661, 6
        %v831 = vsel %vm449, %v828, %v830
        %v832 = vrot.slane %v662, 6
        %v833 = vsel %vm449, %v829, %v832
        %v840 = vsel %vm449, 0.0, %v828
        %v841 = vsel %vm449, 0.0, %v829
        %v842 = vsel %vm449, %v830, 0.0
        %v843 = vsel %vm449, %v832, 0.0
        %v848 = vrot.slane %v840, 1
        %v849 = vrot.slane %v831, 1
        %v850 = vsel %vm507, %v848, %v849
        %v851 = vrot.slane %v841, 1
        %v852 = vrot.slane %v833, 1
        %v853 = vsel %vm507, %v851, %v852
        %v854 = vrot.slane %v842, 1
        %v855 = vsel %vm507, %v849, %v854
        %v856 = vrot.slane %v843, 1
        %v857 = vsel %vm507, %v852, %v856
        %v862 = vrot.slane %v840, 2
        %v863 = vrot.slane %v831, 2
        %v864 = vsel %vm546, %v862, %v863
        %v865 = vrot.slane %v841, 2
        %v866 = vrot.slane %v833, 2
        %v867 = vsel %vm546, %v865, %v866
        %v868 = vrot.slane %v842, 2
        %v869 = vsel %vm546, %v863, %v868
        %v870 = vrot.slane %v843, 2
        %v871 = vsel %vm546, %v866, %v870
        %v876 = vrot.slane %v840, 3
        %v877 = vrot.slane %v831, 3
        %v878 = vsel %vm585, %v876, %v877
        %v879 = vrot.slane %v841, 3
        %v880 = vrot.slane %v833, 3
        %v881 = vsel %vm585, %v879, %v880
        %v882 = vrot.slane %v842, 3
        %v883 = vsel %vm585, %v877, %v882
        %v884 = vrot.slane %v843, 3
        %v885 = vsel %vm585, %v880, %v884
        %v890 = vrot.slane %v840, 4
        %v891 = vrot.slane %v831, 4
        %v892 = vsel %vm624, %v890, %v891
        %v893 = vrot.slane %v841, 4
        %v894 = vrot.slane %v833, 4
        %v895 = vsel %vm624, %v893, %v894
        %v896 = vrot.slane %v842, 4
        %v897 = vsel %vm624, %v891, %v896
        %v898 = vrot.slane %v843, 4
        %v899 = vsel %vm624, %v894, %v898
        %v905 = vlaneseq
        %v906 = vshrl.u32 %v905, 7
        %v907 = vsub.s32 0, %v906
        %v908 = vrot.slane %v823, %v907
        %910 = vmatprep.subr.mxu0 0.0
        %911 = vmatpush1.msra.mxu0 %v663
        %912 = vmatprep.subr.mxu0 0.0
        %913 = vmatpush1.msra.mxu0 %v664
        %914 = vmatprep.subr.mxu0 0.0
        %915 = vmatpush1.msra.mxu0 %v665
        %916 = vmatprep.subr.mxu0 0.0
        %917 = vmatpush1.msra.mxu0 %v666
        %918 = vmatprep.subr.mxu0 0.0
        %919 = vmatpush1.msra.mxu0 %v667
        %920 = vmatprep.subr.mxu0 0.0
        %921 = vmatpush1.msra.mxu0 %v668
        %922 = vmatprep.subr.mxu0 0.0
        %923 = vmatpush1.msra.mxu0 %v669
        %924 = vmatprep.subr.mxu0 0.0
        %925 = vmatpush1.msra.mxu0 %v670
        %926 = vmatprep.subr.mxu0 0.0
        %927 = vmatpush1.msra.mxu0 %v671
        %928 = vmatprep.subr.mxu0 0.0
        %929 = vmatpush1.msra.mxu0 %v672
        %930 = vmatprep.subr.mxu0 0.0
        %931 = vmatpush1.msra.mxu0 %v673
        %932 = vmatprep.subr.mxu0 0.0
        %933 = vmatpush1.msra.mxu0 %v674
        %934 = vmatprep.subr.mxu0 0.0
        %935 = vmatpush1.msra.mxu0 %v675
        %936 = vmatprep.subr.mxu0 0.0
        %937 = vmatpush1.msra.mxu0 %v676
        %938 = vmatprep.subr.mxu0 0.0
        %939 = vmatpush1.msra.mxu0 %v677
        %940 = vmatprep.subr.mxu0 0.0
        %941 = vmatpush1.msra.mxu0 %v678
        %942 = vmatprep.subr.mxu0 0.0
        %943 = vmatpush1.msra.mxu0 %v679
        %944 = vmatprep.subr.mxu0 0.0
        %945 = vmatpush1.msra.mxu0 %v680
        %946 = vmatprep.subr.mxu0 0.0
        %947 = vmatpush1.msra.mxu0 %v681
        %948 = vmatprep.subr.mxu0 0.0
        %949 = vmatpush1.msra.mxu0 %v682
        %950 = vmatprep.subr.mxu0 0.0
        %951 = vmatpush1.msra.mxu0 %v683
        %952 = vmatprep.subr.mxu0 0.0
        %953 = vmatpush1.msra.mxu0 %v684
        %954 = vmatprep.subr.mxu0 0.0
        %955 = vmatpush1.msra.mxu0 %v685
        %956 = vmatprep.subr.mxu0 0.0
        %957 = vmatpush1.msra.mxu0 %v686
        %958 = vmatprep.subr.mxu0 0.0
        %959 = vmatpush1.msra.mxu0 %v687
        %960 = vmatprep.subr.mxu0 0.0
        %961 = vmatpush1.msra.mxu0 %v688
        %962 = vmatprep.subr.mxu0 0.0
        %963 = vmatpush1.msra.mxu0 %v689
        %964 = vmatprep.subr.mxu0 0.0
        %965 = vmatpush1.msra.mxu0 %v690
        %966 = vmatprep.subr.mxu0 0.0
        %967 = vmatpush1.msra.mxu0 %v691
        %968 = vmatprep.subr.mxu0 0.0
        %969 = vmatpush1.msra.mxu0 %v692
        %970 = vmatprep.subr.mxu0 0.0
        %971 = vmatpush1.msra.mxu0 %v693
        %972 = vmatprep.subr.mxu0 0.0
        %973 = vmatpush1.msra.mxu0 %v694
        %974 = vmatprep.mubr.f32.mxu0 %v841
        %975 = vmatmul.mubr.f32.gmra.mrb[0].mxu0 %v840
        %v976 = vpop.f32.mrb[0].mxu0
        %v977 = vadd.f32 %v908, %v976
        %v978 = vpop.f32.mrb[0].mxu0
        %979 = vmatprep.mubr.f32.mxu0 %v833
        %980 = vmatmul.mubr.f32.gmra.mrb[0].mxu0 %v831
        %v981 = vpop.f32.mrb[0].mxu0
        %v982 = vadd.f32 %v908, %v981
        %v983 = vpop.f32.mrb[0].mxu0
        %984 = vdwg.mxu0
        %985 = vmatprep.subr.mxu0 0.0
        %986 = vmatpush1.msra.mxu0 %v695
        %987 = vmatprep.subr.mxu0 0.0
        %988 = vmatpush1.msra.mxu0 %v696
        %989 = vmatprep.subr.mxu0 0.0
        %990 = vmatpush1.msra.mxu0 %v697
        %991 = vmatprep.subr.mxu0 0.0
        %992 = vmatpush1.msra.mxu0 %v698
        %993 = vmatprep.subr.mxu0 0.0
        %994 = vmatpush1.msra.mxu0 %v699
        %995 = vmatprep.subr.mxu0 0.0
        %996 = vmatpush1.msra.mxu0 %v700
        %997 = vmatprep.subr.mxu0 0.0
        %998 = vmatpush1.msra.mxu0 %v701
        %999 = vmatprep.subr.mxu0 0.0
        %1000 = vmatpush1.msra.mxu0 %v702
        %1001 = vmatprep.subr.mxu0 0.0
        %1002 = vmatpush1.msra.mxu0 %v703
        %1003 = vmatprep.subr.mxu0 0.0
        %1004 = vmatpush1.msra.mxu0 %v704
        %1005 = vmatprep.subr.mxu0 0.0
        %1006 = vmatpush1.msra.mxu0 %v705
        %1007 = vmatprep.subr.mxu0 0.0
        %1008 = vmatpush1.msra.mxu0 %v706
        %1009 = vmatprep.subr.mxu0 0.0
        %1010 = vmatpush1.msra.mxu0 %v707
        %1011 = vmatprep.subr.mxu0 0.0
        %1012 = vmatpush1.msra.mxu0 %v708
        %1013 = vmatprep.subr.mxu0 0.0
        %1014 = vmatpush1.msra.mxu0 %v709
        %1015 = vmatprep.subr.mxu0 0.0
        %1016 = vmatpush1.msra.mxu0 %v710
        %1017 = vmatprep.subr.mxu0 0.0
        %1018 = vmatpush1.msra.mxu0 %v711
        %1019 = vmatprep.subr.mxu0 0.0
        %1020 = vmatpush1.msra.mxu0 %v712
        %1021 = vmatprep.subr.mxu0 0.0
        %1022 = vmatpush1.msra.mxu0 %v713
        %1023 = vmatprep.subr.mxu0 0.0
        %1024 = vmatpush1.msra.mxu0 %v714
        %1025 = vmatprep.subr.mxu0 0.0
        %1026 = vmatpush1.msra.mxu0 %v715
        %1027 = vmatprep.subr.mxu0 0.0
        %1028 = vmatpush1.msra.mxu0 %v716
        %1029 = vmatprep.subr.mxu0 0.0
        %1030 = vmatpush1.msra.mxu0 %v717
        %1031 = vmatprep.subr.mxu0 0.0
        %1032 = vmatpush1.msra.mxu0 %v718
        %1033 = vmatprep.subr.mxu0 0.0
        %1034 = vmatpush1.msra.mxu0 %v719
        %1035 = vmatprep.subr.mxu0 0.0
        %1036 = vmatpush1.msra.mxu0 %v720
        %1037 = vmatprep.subr.mxu0 0.0
        %1038 = vmatpush1.msra.mxu0 %v721
        %1039 = vmatprep.subr.mxu0 0.0
        %1040 = vmatpush1.msra.mxu0 %v722
        %1041 = vmatprep.subr.mxu0 0.0
        %1042 = vmatpush1.msra.mxu0 %v723
        %1043 = vmatprep.subr.mxu0 0.0
        %1044 = vmatpush1.msra.mxu0 %v724
        %1045 = vmatprep.subr.mxu0 0.0
        %1046 = vmatpush1.msra.mxu0 %v725
        %1047 = vmatprep.subr.mxu0 0.0
        %1048 = vmatpush1.msra.mxu0 %v726
        %1049 = vmatprep.mubr.f32.mxu0 %v853
        %1050 = vmatmul.mubr.f32.gmra.mrb[0].mxu0 %v850
        %v1051 = vpop.f32.mrb[0].mxu0
        %v1052 = vadd.f32 %v977, %v1051
        %v1053 = vpop.f32.mrb[0].mxu0
        %1054 = vmatprep.mubr.f32.mxu0 %v857
        %1055 = vmatmul.mubr.f32.gmra.mrb[0].mxu0 %v855
        %v1056 = vpop.f32.mrb[0].mxu0
        %v1057 = vadd.f32 %v982, %v1056
        %v1058 = vpop.f32.mrb[0].mxu0
        %1059 = vdwg.mxu0
        %1060 = vmatprep.subr.mxu0 0.0
        %1061 = vmatpush1.msra.mxu0 %v727
        %1062 = vmatprep.subr.mxu0 0.0
        %1063 = vmatpush1.msra.mxu0 %v728
        %1064 = vmatprep.subr.mxu0 0.0
        %1065 = vmatpush1.msra.mxu0 %v729
        %1066 = vmatprep.subr.mxu0 0.0
        %1067 = vmatpush1.msra.mxu0 %v730
        %1068 = vmatprep.subr.mxu0 0.0
        %1069 = vmatpush1.msra.mxu0 %v731
        %1070 = vmatprep.subr.mxu0 0.0
        %1071 = vmatpush1.msra.mxu0 %v732
        %1072 = vmatprep.subr.mxu0 0.0
        %1073 = vmatpush1.msra.mxu0 %v733
        %1074 = vmatprep.subr.mxu0 0.0
        %1075 = vmatpush1.msra.mxu0 %v734
        %1076 = vmatprep.subr.mxu0 0.0
        %1077 = vmatpush1.msra.mxu0 %v735
        %1078 = vmatprep.subr.mxu0 0.0
        %1079 = vmatpush1.msra.mxu0 %v736
        %1080 = vmatprep.subr.mxu0 0.0
        %1081 = vmatpush1.msra.mxu0 %v737
        %1082 = vmatprep.subr.mxu0 0.0
        %1083 = vmatpush1.msra.mxu0 %v738
        %1084 = vmatprep.subr.mxu0 0.0
        %1085 = vmatpush1.msra.mxu0 %v739
        %1086 = vmatprep.subr.mxu0 0.0
        %1087 = vmatpush1.msra.mxu0 %v740
        %1088 = vmatprep.subr.mxu0 0.0
        %1089 = vmatpush1.msra.mxu0 %v741
        %1090 = vmatprep.subr.mxu0 0.0
        %1091 = vmatpush1.msra.mxu0 %v742
        %1092 = vmatprep.subr.mxu0 0.0
        %1093 = vmatpush1.msra.mxu0 %v743
        %1094 = vmatprep.subr.mxu0 0.0
        %1095 = vmatpush1.msra.mxu0 %v744
        %1096 = vmatprep.subr.mxu0 0.0
        %1097 = vmatpush1.msra.mxu0 %v745
        %1098 = vmatprep.subr.mxu0 0.0
        %1099 = vmatpush1.msra.mxu0 %v746
        %1100 = vmatprep.subr.mxu0 0.0
        %1101 = vmatpush1.msra.mxu0 %v747
        %1102 = vmatprep.subr.mxu0 0.0
        %1103 = vmatpush1.msra.mxu0 %v748
        %1104 = vmatprep.subr.mxu0 0.0
        %1105 = vmatpush1.msra.mxu0 %v749
        %1106 = vmatprep.subr.mxu0 0.0
        %1107 = vmatpush1.msra.mxu0 %v750
        %1108 = vmatprep.subr.mxu0 0.0
        %1109 = vmatpush1.msra.mxu0 %v751
        %1110 = vmatprep.subr.mxu0 0.0
        %1111 = vmatpush1.msra.mxu0 %v752
        %1112 = vmatprep.subr.mxu0 0.0
        %1113 = vmatpush1.msra.mxu0 %v753
        %1114 = vmatprep.subr.mxu0 0.0
        %1115 = vmatpush1.msra.mxu0 %v754
        %1116 = vmatprep.subr.mxu0 0.0
        %1117 = vmatpush1.msra.mxu0 %v755
        %1118 = vmatprep.subr.mxu0 0.0
        %1119 = vmatpush1.msra.mxu0 %v756
        %1120 = vmatprep.subr.mxu0 0.0
        %1121 = vmatpush1.msra.mxu0 %v757
        %1122 = vmatprep.subr.mxu0 0.0
        %1123 = vmatpush1.msra.mxu0 %v758
        %1124 = vmatprep.mubr.f32.mxu0 %v867
        %1125 = vmatmul.mubr.f32.gmra.mrb[0].mxu0 %v864
        %v1126 = vpop.f32.mrb[0].mxu0
        %v1127 = vadd.f32 %v1052, %v1126
        %v1128 = vpop.f32.mrb[0].mxu0
        %1129 = vmatprep.mubr.f32.mxu0 %v871
        %1130 = vmatmul.mubr.f32.gmra.mrb[0].mxu0 %v869
        %v1131 = vpop.f32.mrb[0].mxu0
        %v1132 = vadd.f32 %v1057, %v1131
        %v1133 = vpop.f32.mrb[0].mxu0
        %1134 = vdwg.mxu0
        %1135 = vmatprep.subr.mxu0 0.0
        %1136 = vmatpush1.msra.mxu0 %v759
        %1137 = vmatprep.subr.mxu0 0.0
        %1138 = vmatpush1.msra.mxu0 %v760
        %1139 = vmatprep.subr.mxu0 0.0
        %1140 = vmatpush1.msra.mxu0 %v761
        %1141 = vmatprep.subr.mxu0 0.0
        %1142 = vmatpush1.msra.mxu0 %v762
        %1143 = vmatprep.subr.mxu0 0.0
        %1144 = vmatpush1.msra.mxu0 %v763
        %1145 = vmatprep.subr.mxu0 0.0
        %1146 = vmatpush1.msra.mxu0 %v764
        %1147 = vmatprep.subr.mxu0 0.0
        %1148 = vmatpush1.msra.mxu0 %v765
        %1149 = vmatprep.subr.mxu0 0.0
        %1150 = vmatpush1.msra.mxu0 %v766
        %1151 = vmatprep.subr.mxu0 0.0
        %1152 = vmatpush1.msra.mxu0 %v767
        %1153 = vmatprep.subr.mxu0 0.0
        %1154 = vmatpush1.msra.mxu0 %v768
        %1155 = vmatprep.subr.mxu0 0.0
        %1156 = vmatpush1.msra.mxu0 %v769
        %1157 = vmatprep.subr.mxu0 0.0
        %1158 = vmatpush1.msra.mxu0 %v770
        %1159 = vmatprep.subr.mxu0 0.0
        %1160 = vmatpush1.msra.mxu0 %v771
        %1161 = vmatprep.subr.mxu0 0.0
        %1162 = vmatpush1.msra.mxu0 %v772
        %1163 = vmatprep.subr.mxu0 0.0
        %1164 = vmatpush1.msra.mxu0 %v773
        %1165 = vmatprep.subr.mxu0 0.0
        %1166 = vmatpush1.msra.mxu0 %v774
        %1167 = vmatprep.subr.mxu0 0.0
        %1168 = vmatpush1.msra.mxu0 %v775
        %1169 = vmatprep.subr.mxu0 0.0
        %1170 = vmatpush1.msra.mxu0 %v776
        %1171 = vmatprep.subr.mxu0 0.0
        %1172 = vmatpush1.msra.mxu0 %v777
        %1173 = vmatprep.subr.mxu0 0.0
        %1174 = vmatpush1.msra.mxu0 %v778
        %1175 = vmatprep.subr.mxu0 0.0
        %1176 = vmatpush1.msra.mxu0 %v779
        %1177 = vmatprep.subr.mxu0 0.0
        %1178 = vmatpush1.msra.mxu0 %v780
        %1179 = vmatprep.subr.mxu0 0.0
        %1180 = vmatpush1.msra.mxu0 %v781
        %1181 = vmatprep.subr.mxu0 0.0
        %1182 = vmatpush1.msra.mxu0 %v782
        %1183 = vmatprep.subr.mxu0 0.0
        %1184 = vmatpush1.msra.mxu0 %v783
        %1185 = vmatprep.subr.mxu0 0.0
        %1186 = vmatpush1.msra.mxu0 %v784
        %1187 = vmatprep.subr.mxu0 0.0
        %1188 = vmatpush1.msra.mxu0 %v785
        %1189 = vmatprep.subr.mxu0 0.0
        %1190 = vmatpush1.msra.mxu0 %v786
        %1191 = vmatprep.subr.mxu0 0.0
        %1192 = vmatpush1.msra.mxu0 %v787
        %1193 = vmatprep.subr.mxu0 0.0
        %1194 = vmatpush1.msra.mxu0 %v788
        %1195 = vmatprep.subr.mxu0 0.0
        %1196 = vmatpush1.msra.mxu0 %v789
        %1197 = vmatprep.subr.mxu0 0.0
        %1198 = vmatpush1.msra.mxu0 %v790
        %1199 = vmatprep.mubr.f32.mxu0 %v881
        %1200 = vmatmul.mubr.f32.gmra.mrb[0].mxu0 %v878
        %v1201 = vpop.f32.mrb[0].mxu0
        %v1202 = vadd.f32 %v1127, %v1201
        %v1203 = vpop.f32.mrb[0].mxu0
        %1204 = vmatprep.mubr.f32.mxu0 %v885
        %1205 = vmatmul.mubr.f32.gmra.mrb[0].mxu0 %v883
        %v1206 = vpop.f32.mrb[0].mxu0
        %v1207 = vadd.f32 %v1132, %v1206
        %v1208 = vpop.f32.mrb[0].mxu0
        %1209 = vdwg.mxu0
        %1210 = vmatprep.subr.mxu0 0.0
        %1211 = vmatpush1.msra.mxu0 %v791
        %1212 = vmatprep.subr.mxu0 0.0
        %1213 = vmatpush1.msra.mxu0 %v792
        %1214 = vmatprep.subr.mxu0 0.0
        %1215 = vmatpush1.msra.mxu0 %v793
        %1216 = vmatprep.subr.mxu0 0.0
        %1217 = vmatpush1.msra.mxu0 %v794
        %1218 = vmatprep.subr.mxu0 0.0
        %1219 = vmatpush1.msra.mxu0 %v795
        %1220 = vmatprep.subr.mxu0 0.0
        %1221 = vmatpush1.msra.mxu0 %v796
        %1222 = vmatprep.subr.mxu0 0.0
        %1223 = vmatpush1.msra.mxu0 %v797
        %1224 = vmatprep.subr.mxu0 0.0
        %1225 = vmatpush1.msra.mxu0 %v798
        %1226 = vmatprep.subr.mxu0 0.0
        %1227 = vmatpush1.msra.mxu0 %v799
        %1228 = vmatprep.subr.mxu0 0.0
        %1229 = vmatpush1.msra.mxu0 %v800
        %1230 = vmatprep.subr.mxu0 0.0
        %1231 = vmatpush1.msra.mxu0 %v801
        %1232 = vmatprep.subr.mxu0 0.0
        %1233 = vmatpush1.msra.mxu0 %v802
        %1234 = vmatprep.subr.mxu0 0.0
        %1235 = vmatpush1.msra.mxu0 %v803
        %1236 = vmatprep.subr.mxu0 0.0
        %1237 = vmatpush1.msra.mxu0 %v804
        %1238 = vmatprep.subr.mxu0 0.0
        %1239 = vmatpush1.msra.mxu0 %v805
        %1240 = vmatprep.subr.mxu0 0.0
        %1241 = vmatpush1.msra.mxu0 %v806
        %1242 = vmatprep.subr.mxu0 0.0
        %1243 = vmatpush1.msra.mxu0 %v807
        %1244 = vmatprep.subr.mxu0 0.0
        %1245 = vmatpush1.msra.mxu0 %v808
        %1246 = vmatprep.subr.mxu0 0.0
        %1247 = vmatpush1.msra.mxu0 %v809
        %1248 = vmatprep.subr.mxu0 0.0
        %1249 = vmatpush1.msra.mxu0 %v810
        %1250 = vmatprep.subr.mxu0 0.0
        %1251 = vmatpush1.msra.mxu0 %v811
        %1252 = vmatprep.subr.mxu0 0.0
        %1253 = vmatpush1.msra.mxu0 %v812
        %1254 = vmatprep.subr.mxu0 0.0
        %1255 = vmatpush1.msra.mxu0 %v813
        %1256 = vmatprep.subr.mxu0 0.0
        %1257 = vmatpush1.msra.mxu0 %v814
        %1258 = vmatprep.subr.mxu0 0.0
        %1259 = vmatpush1.msra.mxu0 %v815
        %1260 = vmatprep.subr.mxu0 0.0
        %1261 = vmatpush1.msra.mxu0 %v816
        %1262 = vmatprep.subr.mxu0 0.0
        %1263 = vmatpush1.msra.mxu0 %v817
        %1264 = vmatprep.subr.mxu0 0.0
        %1265 = vmatpush1.msra.mxu0 %v818
        %1266 = vmatprep.subr.mxu0 0.0
        %1267 = vmatpush1.msra.mxu0 %v819
        %1268 = vmatprep.subr.mxu0 0.0
        %1269 = vmatpush1.msra.mxu0 %v820
        %1270 = vmatprep.subr.mxu0 0.0
        %1271 = vmatpush1.msra.mxu0 %v821
        %1272 = vmatprep.subr.mxu0 0.0
        %1273 = vmatpush1.msra.mxu0 %v822
        %1274 = vmatprep.mubr.f32.mxu0 %v895
        %1275 = vmatmul.mubr.f32.gmra.mrb[0].mxu0 %v892
        %v1276 = vpop.f32.mrb[0].mxu0
        %v1277 = vadd.f32 %v1202, %v1276
        %v1278 = vpop.f32.mrb[0].mxu0
        %1279 = vmatprep.mubr.f32.mxu0 %v899
        %1280 = vmatmul.mubr.f32.gmra.mrb[0].mxu0 %v897
        %v1281 = vpop.f32.mrb[0].mxu0
        %v1282 = vadd.f32 %v1207, %v1281
        %v1283 = vpop.f32.mrb[0].mxu0
        %1284 = vdwg.mxu0
        %v1285 = vmax.f32 %v1277, 0.0
        %v1286 = vmax.f32 %v1282, 0.0
        %v1287 = vrot.slane %v1285, 4
        %v1288 = vmax.f32 %v1285, %v1287
        %v1289 = vrot.slane %v1288, 2
        %v1290 = vmax.f32 %v1288, %v1289
        %v1291 = vrot.slane %v1290, 1
        %v1292 = vmax.f32 %v1290, %v1291
        %v1293 = vrot.slane %v1286, 4
        %v1294 = vmax.f32 %v1286, %v1293
        %v1295 = vrot.slane %v1294, 2
        %v1296 = vmax.f32 %v1294, %v1295
        %v1297 = vrot.slane %v1296, 1
        %v1298 = vmax.f32 %v1296, %v1297
        %v1299 = vld [vmem:[#allocation5] sm:$0xff]
        %v1300 = vld [vmem:[#allocation5 + $0x8] sm:$0xff]
        %v1301 = vld [vmem:[#allocation5 + $0x10] sm:$0xff]
        %v1302 = vld [vmem:[#allocation5 + $0x18] sm:$0xff]
        %v1303 = vld [vmem:[#allocation5 + $0x20] sm:$0xff]
        %v1304 = vld [vmem:[#allocation5 + $0x28] sm:$0xff]
        %v1305 = vld [vmem:[#allocation5 + $0x30] sm:$0xff]
        %v1306 = vld [vmem:[#allocation5 + $0x38] sm:$0xff]
        %v1307 = vld [vmem:[#allocation5 + $0x40] sm:$0xff]
        %v1308 = vld [vmem:[#allocation5 + $0x48] sm:$0xff]
        %v1309 = vld [vmem:[#allocation5 + $0x50] sm:$0xff]
        %v1310 = vld [vmem:[#allocation5 + $0x58] sm:$0xff]
        %v1311 = vld [vmem:[#allocation5 + $0x60] sm:$0xff]
        %v1312 = vld [vmem:[#allocation5 + $0x68] sm:$0xff]
        %v1313 = vld [vmem:[#allocation5 + $0x70] sm:$0xff]
        %v1314 = vld [vmem:[#allocation5 + $0x78] sm:$0xff]
        %v1315 = vld [vmem:[#allocation5 + $0x80] sm:$0xff]
        %v1316 = vld [vmem:[#allocation5 + $0x88] sm:$0xff]
        %v1317 = vld [vmem:[#allocation5 + $0x90] sm:$0xff]
        %v1318 = vld [vmem:[#allocation5 + $0x98] sm:$0xff]
        %v1319 = vld [vmem:[#allocation5 + $0xa0] sm:$0xff]
        %v1320 = vld [vmem:[#allocation5 + $0xa8] sm:$0xff]
        %v1321 = vld [vmem:[#allocation5 + $0xb0] sm:$0xff]
        %v1322 = vld [vmem:[#allocation5 + $0xb8] sm:$0xff]
        %v1323 = vld [vmem:[#allocation5 + $0xc0] sm:$0xff]
        %v1324 = vld [vmem:[#allocation5 + $0xc8] sm:$0xff]
        %v1325 = vld [vmem:[#allocation5 + $0xd0] sm:$0xff]
        %v1326 = vld [vmem:[#allocation5 + $0xd8] sm:$0xff]
        %v1327 = vld [vmem:[#allocation5 + $0xe0] sm:$0xff]
        %v1328 = vld [vmem:[#allocation5 + $0xe8] sm:$0xff]
        %v1329 = vld [vmem:[#allocation5 + $0xf0] sm:$0xff]
        %v1330 = vld [vmem:[#allocation5 + $0xf8] sm:$0xff]
        %v1331 = vld [vmem:[#allocation5 + $0x100] sm:$0xff]
        %v1332 = vld [vmem:[#allocation5 + $0x108] sm:$0xff]
        %v1333 = vld [vmem:[#allocation5 + $0x110] sm:$0xff]
        %v1334 = vld [vmem:[#allocation5 + $0x118] sm:$0xff]
        %v1335 = vld [vmem:[#allocation5 + $0x120] sm:$0xff]
        %v1336 = vld [vmem:[#allocation5 + $0x128] sm:$0xff]
        %v1337 = vld [vmem:[#allocation5 + $0x130] sm:$0xff]
        %v1338 = vld [vmem:[#allocation5 + $0x138] sm:$0xff]
        %v1339 = vld [vmem:[#allocation5 + $0x140] sm:$0xff]
        %v1340 = vld [vmem:[#allocation5 + $0x148] sm:$0xff]
        %v1341 = vld [vmem:[#allocation5 + $0x150] sm:$0xff]
        %v1342 = vld [vmem:[#allocation5 + $0x158] sm:$0xff]
        %v1343 = vld [vmem:[#allocation5 + $0x160] sm:$0xff]
        %v1344 = vld [vmem:[#allocation5 + $0x168] sm:$0xff]
        %v1345 = vld [vmem:[#allocation5 + $0x170] sm:$0xff]
        %v1346 = vld [vmem:[#allocation5 + $0x178] sm:$0xff]
        %v1347 = vld [vmem:[#allocation5 + $0x180] sm:$0xff]
        %v1348 = vld [vmem:[#allocation5 + $0x188] sm:$0xff]
        %v1349 = vld [vmem:[#allocation5 + $0x190] sm:$0xff]
        %v1350 = vld [vmem:[#allocation5 + $0x198] sm:$0xff]
        %v1351 = vld [vmem:[#allocation5 + $0x1a0] sm:$0xff]
        %v1352 = vld [vmem:[#allocation5 + $0x1a8] sm:$0xff]
        %v1353 = vld [vmem:[#allocation5 + $0x1b0] sm:$0xff]
        %v1354 = vld [vmem:[#allocation5 + $0x1b8] sm:$0xff]
        %v1355 = vld [vmem:[#allocation5 + $0x1c0] sm:$0xff]
        %v1356 = vld [vmem:[#allocation5 + $0x1c8] sm:$0xff]
        %v1357 = vld [vmem:[#allocation5 + $0x1d0] sm:$0xff]
        %v1358 = vld [vmem:[#allocation5 + $0x1d8] sm:$0xff]
        %v1359 = vld [vmem:[#allocation5 + $0x1e0] sm:$0xff]
        %v1360 = vld [vmem:[#allocation5 + $0x1e8] sm:$0xff]
        %v1361 = vld [vmem:[#allocation5 + $0x1f0] sm:$0xff]
        %v1362 = vld [vmem:[#allocation5 + $0x1f8] sm:$0xff]
        %v1363 = vld [vmem:[#allocation5 + $0x200] sm:$0xff]
        %v1364 = vld [vmem:[#allocation5 + $0x208] sm:$0xff]
        %v1365 = vld [vmem:[#allocation5 + $0x210] sm:$0xff]
        %v1366 = vld [vmem:[#allocation5 + $0x218] sm:$0xff]
        %v1367 = vld [vmem:[#allocation5 + $0x220] sm:$0xff]
        %v1368 = vld [vmem:[#allocation5 + $0x228] sm:$0xff]
        %v1369 = vld [vmem:[#allocation5 + $0x230] sm:$0xff]
        %v1370 = vld [vmem:[#allocation5 + $0x238] sm:$0xff]
        %v1371 = vld [vmem:[#allocation5 + $0x240] sm:$0xff]
        %v1372 = vld [vmem:[#allocation5 + $0x248] sm:$0xff]
        %v1373 = vld [vmem:[#allocation5 + $0x250] sm:$0xff]
        %v1374 = vld [vmem:[#allocation5 + $0x258] sm:$0xff]
        %v1375 = vld [vmem:[#allocation5 + $0x260] sm:$0xff]
        %v1376 = vld [vmem:[#allocation5 + $0x268] sm:$0xff]
        %v1377 = vld [vmem:[#allocation5 + $0x270] sm:$0xff]
        %v1378 = vld [vmem:[#allocation5 + $0x278] sm:$0xff]
        %v1379 = vld [vmem:[%s6] sm:$0x1]
        %vm1382 = vcmask 1043459
        %v1383 = vsel %vm1382, %v1298, %v1292
        %v1385 = vsel %vm449, 0.0, %v1383
        %v1386 = vsel %vm624, %v1385, 0.0
        %v1388 = vrot.slane %v1386, 1
        %v1390 = vrot.slane %v1386, 2
        %v1392 = vrot.slane %v1386, 3
        %v1394 = vrot.slane %v1386, 4
        %v1397 = vlaneseq
        %v1398 = vshrl.u32 %v1397, 7
        %v1399 = vsub.s32 0, %v1398
        %v1400 = vrot.slane %v1379, %v1399
        %1402 = vmatprep.subr.mxu0 0.0
        %1403 = vmatpush1.msra.mxu0 %v1299
        %1404 = vmatprep.subr.mxu0 0.0
        %1405 = vmatpush1.msra.mxu0 %v1300
        %1406 = vmatprep.subr.mxu0 0.0
        %1407 = vmatpush1.msra.mxu0 %v1301
        %1408 = vmatprep.subr.mxu0 0.0
        %1409 = vmatpush1.msra.mxu0 %v1302
        %1410 = vmatprep.subr.mxu0 0.0
        %1411 = vmatpush1.msra.mxu0 %v1303
        %1412 = vmatprep.subr.mxu0 0.0
        %1413 = vmatpush1.msra.mxu0 %v1304
        %1414 = vmatprep.subr.mxu0 0.0
        %1415 = vmatpush1.msra.mxu0 %v1305
        %1416 = vmatprep.subr.mxu0 0.0
        %1417 = vmatpush1.msra.mxu0 %v1306
        %1418 = vmatprep.subr.mxu0 0.0
        %1419 = vmatpush1.msra.mxu0 %v1307
        %1420 = vmatprep.subr.mxu0 0.0
        %1421 = vmatpush1.msra.mxu0 %v1308
        %1422 = vmatprep.subr.mxu0 0.0
        %1423 = vmatpush1.msra.mxu0 %v1309
        %1424 = vmatprep.subr.mxu0 0.0
        %1425 = vmatpush1.msra.mxu0 %v1310
        %1426 = vmatprep.subr.mxu0 0.0
        %1427 = vmatpush1.msra.mxu0 %v1311
        %1428 = vmatprep.subr.mxu0 0.0
        %1429 = vmatpush1.msra.mxu0 %v1312
        %1430 = vmatprep.subr.mxu0 0.0
        %1431 = vmatpush1.msra.mxu0 %v1313
        %1432 = vmatprep.subr.mxu0 0.0
        %1433 = vmatpush1.msra.mxu0 %v1314
        %1434 = vmatprep.subr.mxu0 0.0
        %1435 = vmatpush1.msra.mxu0 %v1315
        %1436 = vmatprep.subr.mxu0 0.0
        %1437 = vmatpush1.msra.mxu0 %v1316
        %1438 = vmatprep.subr.mxu0 0.0
        %1439 = vmatpush1.msra.mxu0 %v1317
        %1440 = vmatprep.subr.mxu0 0.0
        %1441 = vmatpush1.msra.mxu0 %v1318
        %1442 = vmatprep.subr.mxu0 0.0
        %1443 = vmatpush1.msra.mxu0 %v1319
        %1444 = vmatprep.subr.mxu0 0.0
        %1445 = vmatpush1.msra.mxu0 %v1320
        %1446 = vmatprep.subr.mxu0 0.0
        %1447 = vmatpush1.msra.mxu0 %v1321
        %1448 = vmatprep.subr.mxu0 0.0
        %1449 = vmatpush1.msra.mxu0 %v1322
        %1450 = vmatprep.subr.mxu0 0.0
        %1451 = vmatpush1.msra.mxu0 %v1323
        %1452 = vmatprep.subr.mxu0 0.0
        %1453 = vmatpush1.msra.mxu0 %v1324
        %1454 = vmatprep.subr.mxu0 0.0
        %1455 = vmatpush1.msra.mxu0 %v1325
        %1456 = vmatprep.subr.mxu0 0.0
        %1457 = vmatpush1.msra.mxu0 %v1326
        %1458 = vmatprep.subr.mxu0 0.0
        %1459 = vmatpush1.msra.mxu0 %v1327
        %1460 = vmatprep.subr.mxu0 0.0
        %1461 = vmatpush1.msra.mxu0 %v1328
        %1462 = vmatprep.subr.mxu0 0.0
        %1463 = vmatpush1.msra.mxu0 %v1329
        %1464 = vmatprep.subr.mxu0 0.0
        %1465 = vmatpush1.msra.mxu0 %v1330
        %1466 = vmatprep.mubr.f32.mxu0 %v1388
        %1467 = vmatmul.mubr.f32.gmra.mrb[0].mxu0 %v1386
        %v1468 = vpop.f32.mrb[0].mxu0
        %v1469 = vadd.f32 %v1400, %v1468
        %v1470 = vpop.f32.mrb[0].mxu0
        %1471 = vdwg.mxu0
        %1472 = vmatprep.subr.mxu0 0.0
        %1473 = vmatpush1.msra.mxu0 %v1331
        %1474 = vmatprep.subr.mxu0 0.0
        %1475 = vmatpush1.msra.mxu0 %v1332
        %1476 = vmatprep.subr.mxu0 0.0
        %1477 = vmatpush1.msra.mxu0 %v1333
        %1478 = vmatprep.subr.mxu0 0.0
        %1479 = vmatpush1.msra.mxu0 %v1334
        %1480 = vmatprep.subr.mxu0 0.0
        %1481 = vmatpush1.msra.mxu0 %v1335
        %1482 = vmatprep.subr.mxu0 0.0
        %1483 = vmatpush1.msra.mxu0 %v1336
        %1484 = vmatprep.subr.mxu0 0.0
        %1485 = vmatpush1.msra.mxu0 %v1337
        %1486 = vmatprep.subr.mxu0 0.0
        %1487 = vmatpush1.msra.mxu0 %v1338
        %1488 = vmatprep.subr.mxu0 0.0
        %1489 = vmatpush1.msra.mxu0 %v1339
        %1490 = vmatprep.subr.mxu0 0.0
        %1491 = vmatpush1.msra.mxu0 %v1340
        %1492 = vmatprep.subr.mxu0 0.0
        %1493 = vmatpush1.msra.mxu0 %v1341
        %1494 = vmatprep.subr.mxu0 0.0
        %1495 = vmatpush1.msra.mxu0 %v1342
        %1496 = vmatprep.subr.mxu0 0.0
        %1497 = vmatpush1.msra.mxu0 %v1343
        %1498 = vmatprep.subr.mxu0 0.0
        %1499 = vmatpush1.msra.mxu0 %v1344
        %1500 = vmatprep.subr.mxu0 0.0
        %1501 = vmatpush1.msra.mxu0 %v1345
        %1502 = vmatprep.subr.mxu0 0.0
        %1503 = vmatpush1.msra.mxu0 %v1346
        %1504 = vmatprep.subr.mxu0 0.0
        %1505 = vmatpush1.msra.mxu0 %v1347
        %1506 = vmatprep.subr.mxu0 0.0
        %1507 = vmatpush1.msra.mxu0 %v1348
        %1508 = vmatprep.subr.mxu0 0.0
        %1509 = vmatpush1.msra.mxu0 %v1349
        %1510 = vmatprep.subr.mxu0 0.0
        %1511 = vmatpush1.msra.mxu0 %v1350
        %1512 = vmatprep.subr.mxu0 0.0
        %1513 = vmatpush1.msra.mxu0 %v1351
        %1514 = vmatprep.subr.mxu0 0.0
        %1515 = vmatpush1.msra.mxu0 %v1352
        %1516 = vmatprep.subr.mxu0 0.0
        %1517 = vmatpush1.msra.mxu0 %v1353
        %1518 = vmatprep.subr.mxu0 0.0
        %1519 = vmatpush1.msra.mxu0 %v1354
        %1520 = vmatprep.subr.mxu0 0.0
        %1521 = vmatpush1.msra.mxu0 %v1355
        %1522 = vmatprep.subr.mxu0 0.0
        %1523 = vmatpush1.msra.mxu0 %v1356
        %1524 = vmatprep.subr.mxu0 0.0
        %1525 = vmatpush1.msra.mxu0 %v1357
        %1526 = vmatprep.subr.mxu0 0.0
        %1527 = vmatpush1.msra.mxu0 %v1358
        %1528 = vmatprep.subr.mxu0 0.0
        %1529 = vmatpush1.msra.mxu0 %v1359
        %1530 = vmatprep.subr.mxu0 0.0
        %1531 = vmatpush1.msra.mxu0 %v1360
        %1532 = vmatprep.subr.mxu0 0.0
        %1533 = vmatpush1.msra.mxu0 %v1361
        %1534 = vmatprep.subr.mxu0 0.0
        %1535 = vmatpush1.msra.mxu0 %v1362
        %1536 = vmatprep.mubr.f32.mxu0 %v1392
        %1537 = vmatmul.mubr.f32.gmra.mrb[0].mxu0 %v1390
        %v1538 = vpop.f32.mrb[0].mxu0
        %v1539 = vadd.f32 %v1469, %v1538
        %v1540 = vpop.f32.mrb[0].mxu0
        %1541 = vdwg.mxu0
        %1542 = vmatprep.subr.mxu0 0.0
        %1543 = vmatpush1.msra.mxu0 %v1363
        %1544 = vmatprep.subr.mxu0 0.0
        %1545 = vmatpush1.msra.mxu0 %v1364
        %1546 = vmatprep.subr.mxu0 0.0
        %1547 = vmatpush1.msra.mxu0 %v1365
        %1548 = vmatprep.subr.mxu0 0.0
        %1549 = vmatpush1.msra.mxu0 %v1366
        %1550 = vmatprep.subr.mxu0 0.0
        %1551 = vmatpush1.msra.mxu0 %v1367
        %1552 = vmatprep.subr.mxu0 0.0
        %1553 = vmatpush1.msra.mxu0 %v1368
        %1554 = vmatprep.subr.mxu0 0.0
        %1555 = vmatpush1.msra.mxu0 %v1369
        %1556 = vmatprep.subr.mxu0 0.0
        %1557 = vmatpush1.msra.mxu0 %v1370
        %1558 = vmatprep.subr.mxu0 0.0
        %1559 = vmatpush1.msra.mxu0 %v1371
        %1560 = vmatprep.subr.mxu0 0.0
        %1561 = vmatpush1.msra.mxu0 %v1372
        %1562 = vmatprep.subr.mxu0 0.0
        %1563 = vmatpush1.msra.mxu0 %v1373
        %1564 = vmatprep.subr.mxu0 0.0
        %1565 = vmatpush1.msra.mxu0 %v1374
        %1566 = vmatprep.subr.mxu0 0.0
        %1567 = vmatpush1.msra.mxu0 %v1375
        %1568 = vmatprep.subr.mxu0 0.0
        %1569 = vmatpush1.msra.mxu0 %v1376
        %1570 = vmatprep.subr.mxu0 0.0
        %1571 = vmatpush1.msra.mxu0 %v1377
        %1572 = vmatprep.subr.mxu0 0.0
        %1573 = vmatpush1.msra.mxu0 %v1378
        %1574 = vmatprep.subr.mxu0 0.0
        %1575 = vmatpush1.msra.mxu0 0.0
        %1576 = vmatprep.subr.mxu0 0.0
        %1577 = vmatpush1.msra.mxu0 0.0
        %1578 = vmatprep.subr.mxu0 0.0
        %1579 = vmatpush1.msra.mxu0 0.0
        %1580 = vmatprep.subr.mxu0 0.0
        %1581 = vmatpush1.msra.mxu0 0.0
        %1582 = vmatprep.subr.mxu0 0.0
        %1583 = vmatpush1.msra.mxu0 0.0
        %1584 = vmatprep.subr.mxu0 0.0
        %1585 = vmatpush1.msra.mxu0 0.0
        %1586 = vmatprep.subr.mxu0 0.0
        %1587 = vmatpush1.msra.mxu0 0.0
        %1588 = vmatprep.subr.mxu0 0.0
        %1589 = vmatpush1.msra.mxu0 0.0
        %1590 = vmatprep.subr.mxu0 0.0
        %1591 = vmatpush1.msra.mxu0 0.0
        %1592 = vmatprep.subr.mxu0 0.0
        %1593 = vmatpush1.msra.mxu0 0.0
        %1594 = vmatprep.subr.mxu0 0.0
        %1595 = vmatpush1.msra.mxu0 0.0
        %1596 = vmatprep.subr.mxu0 0.0
        %1597 = vmatpush1.msra.mxu0 0.0
        %1598 = vmatprep.subr.mxu0 0.0
        %1599 = vmatpush1.msra.mxu0 0.0
        %1600 = vmatprep.subr.mxu0 0.0
        %1601 = vmatpush1.msra.mxu0 0.0
        %1602 = vmatprep.subr.mxu0 0.0
        %1603 = vmatpush1.msra.mxu0 0.0
        %1604 = vmatprep.subr.mxu0 0.0
        %1605 = vmatpush1.msra.mxu0 0.0
        %1606 = vmatprep.mubr.f32.mxu0 0.0
        %1607 = vmatmul.mubr.f32.gmra.mrb[0].mxu0 %v1394
        %v1608 = vpop.f32.mrb[0].mxu0
        %v1609 = vadd.f32 %v1539, %v1608
        %v1610 = vpop.f32.mrb[0].mxu0
        %1611 = vdwg.mxu0
        %v1612 = vmax.f32 %v1609, 0.0
        %v1613 = vld [vmem:[#allocation7] sm:$0xff]
        %v1614 = vld [vmem:[#allocation7 + $0x8] sm:$0xff]
        %v1615 = vld [vmem:[#allocation7 + $0x10] sm:$0xff]
        %v1616 = vld [vmem:[#allocation7 + $0x18] sm:$0xff]
        %v1617 = vld [vmem:[#allocation7 + $0x20] sm:$0xff]
        %v1618 = vld [vmem:[#allocation7 + $0x28] sm:$0xff]
        %v1619 = vld [vmem:[#allocation7 + $0x30] sm:$0xff]
        %v1620 = vld [vmem:[#allocation7 + $0x38] sm:$0xff]
        %v1621 = vld [vmem:[#allocation7 + $0x40] sm:$0xff]
        %v1622 = vld [vmem:[#allocation7 + $0x48] sm:$0xff]
        %v1623 = vld [vmem:[#allocation7 + $0x50] sm:$0xff]
        %v1624 = vld [vmem:[#allocation7 + $0x58] sm:$0xff]
        %v1625 = vld [vmem:[#allocation7 + $0x60] sm:$0xff]
        %v1626 = vld [vmem:[#allocation7 + $0x68] sm:$0xff]
        %v1627 = vld [vmem:[#allocation7 + $0x70] sm:$0xff]
        %v1628 = vld [vmem:[#allocation7 + $0x78] sm:$0xff]
        %v1629 = vld [vmem:[#allocation7 + $0x80] sm:$0xff]
        %v1630 = vld [vmem:[#allocation7 + $0x88] sm:$0xff]
        %v1631 = vld [vmem:[#allocation7 + $0x90] sm:$0xff]
        %v1632 = vld [vmem:[#allocation7 + $0x98] sm:$0xff]
        %v1633 = vld [vmem:[#allocation7 + $0xa0] sm:$0xff]
        %v1634 = vld [vmem:[#allocation7 + $0xa8] sm:$0xff]
        %v1635 = vld [vmem:[#allocation7 + $0xb0] sm:$0xff]
        %v1636 = vld [vmem:[#allocation7 + $0xb8] sm:$0xff]
        %v1637 = vld [vmem:[#allocation7 + $0xc0] sm:$0xff]
        %v1638 = vld [vmem:[#allocation7 + $0xc8] sm:$0xff]
        %v1639 = vld [vmem:[#allocation7 + $0xd0] sm:$0xff]
        %v1640 = vld [vmem:[#allocation7 + $0xd8] sm:$0xff]
        %v1641 = vld [vmem:[#allocation7 + $0xe0] sm:$0xff]
        %v1642 = vld [vmem:[#allocation7 + $0xe8] sm:$0xff]
        %v1643 = vld [vmem:[#allocation7 + $0xf0] sm:$0xff]
        %v1644 = vld [vmem:[#allocation7 + $0xf8] sm:$0xff]
        %v1645 = vld [vmem:[#allocation7 + $0x100] sm:$0xff]
        %v1646 = vld [vmem:[#allocation7 + $0x108] sm:$0xff]
        %v1647 = vld [vmem:[#allocation7 + $0x110] sm:$0xff]
        %v1648 = vld [vmem:[#allocation7 + $0x118] sm:$0xff]
        %v1649 = vld [vmem:[#allocation7 + $0x120] sm:$0xff]
        %v1650 = vld [vmem:[#allocation7 + $0x128] sm:$0xff]
        %v1651 = vld [vmem:[#allocation7 + $0x130] sm:$0xff]
        %v1652 = vld [vmem:[#allocation7 + $0x138] sm:$0xff]
        %v1653 = vld [vmem:[#allocation7 + $0x140] sm:$0xff]
        %v1654 = vld [vmem:[#allocation7 + $0x148] sm:$0xff]
        %v1655 = vld [vmem:[#allocation7 + $0x150] sm:$0xff]
        %v1656 = vld [vmem:[#allocation7 + $0x158] sm:$0xff]
        %v1657 = vld [vmem:[#allocation7 + $0x160] sm:$0xff]
        %v1658 = vld [vmem:[#allocation7 + $0x168] sm:$0xff]
        %v1659 = vld [vmem:[#allocation7 + $0x170] sm:$0xff]
        %v1660 = vld [vmem:[#allocation7 + $0x178] sm:$0xff]
        %v1661 = vld [vmem:[#allocation7 + $0x180] sm:$0xff]
        %v1662 = vld [vmem:[#allocation7 + $0x188] sm:$0xff]
        %v1663 = vld [vmem:[#allocation7 + $0x190] sm:$0xff]
        %v1664 = vld [vmem:[#allocation7 + $0x198] sm:$0xff]
        %v1665 = vld [vmem:[#allocation7 + $0x1a0] sm:$0xff]
        %v1666 = vld [vmem:[#allocation7 + $0x1a8] sm:$0xff]
        %v1667 = vld [vmem:[#allocation7 + $0x1b0] sm:$0xff]
        %v1668 = vld [vmem:[#allocation7 + $0x1b8] sm:$0xff]
        %v1669 = vld [vmem:[#allocation7 + $0x1c0] sm:$0xff]
        %v1670 = vld [vmem:[#allocation7 + $0x1c8] sm:$0xff]
        %v1671 = vld [vmem:[#allocation7 + $0x1d0] sm:$0xff]
        %v1672 = vld [vmem:[#allocation7 + $0x1d8] sm:$0xff]
        %v1673 = vld [vmem:[#allocation7 + $0x1e0] sm:$0xff]
        %v1674 = vld [vmem:[#allocation7 + $0x1e8] sm:$0xff]
        %v1675 = vld [vmem:[#allocation7 + $0x1f0] sm:$0xff]
        %v1676 = vld [vmem:[#allocation7 + $0x1f8] sm:$0xff]
        %v1677 = vld [vmem:[#allocation7 + $0x200] sm:$0xff]
        %v1678 = vld [vmem:[#allocation7 + $0x208] sm:$0xff]
        %v1679 = vld [vmem:[#allocation7 + $0x210] sm:$0xff]
        %v1680 = vld [vmem:[#allocation7 + $0x218] sm:$0xff]
        %v1681 = vld [vmem:[#allocation7 + $0x220] sm:$0xff]
        %v1682 = vld [vmem:[#allocation7 + $0x228] sm:$0xff]
        %v1683 = vld [vmem:[#allocation7 + $0x230] sm:$0xff]
        %v1684 = vld [vmem:[#allocation7 + $0x238] sm:$0xff]
        %v1685 = vld [vmem:[#allocation7 + $0x240] sm:$0xff]
        %v1686 = vld [vmem:[#allocation7 + $0x248] sm:$0xff]
        %v1687 = vld [vmem:[#allocation7 + $0x250] sm:$0xff]
        %v1688 = vld [vmem:[#allocation7 + $0x258] sm:$0xff]
        %v1689 = vld [vmem:[#allocation7 + $0x260] sm:$0xff]
        %v1690 = vld [vmem:[#allocation7 + $0x268] sm:$0xff]
        %v1691 = vld [vmem:[#allocation7 + $0x270] sm:$0xff]
        %v1692 = vld [vmem:[#allocation7 + $0x278] sm:$0xff]
        %v1693 = vld [vmem:[%s8] sm:$0x1]
        %v1695 = vrot.slane %v1612, 6
        %v1697 = vsel %vm449, 0.0, %v1695
        %v1698 = vsel %vm624, %v1697, 0.0
        %v1700 = vrot.slane %v1698, 1
        %v1702 = vrot.slane %v1698, 2
        %v1704 = vrot.slane %v1698, 3
        %v1706 = vrot.slane %v1698, 4
        %v1709 = vlaneseq
        %v1710 = vshrl.u32 %v1709, 7
        %v1711 = vsub.s32 0, %v1710
        %v1712 = vrot.slane %v1693, %v1711
        %1714 = vmatprep.subr.mxu0 0.0
        %1715 = vmatpush1.msra.mxu0 %v1613
        %1716 = vmatprep.subr.mxu0 0.0
        %1717 = vmatpush1.msra.mxu0 %v1614
        %1718 = vmatprep.subr.mxu0 0.0
        %1719 = vmatpush1.msra.mxu0 %v1615
        %1720 = vmatprep.subr.mxu0 0.0
        %1721 = vmatpush1.msra.mxu0 %v1616
        %1722 = vmatprep.subr.mxu0 0.0
        %1723 = vmatpush1.msra.mxu0 %v1617
        %1724 = vmatprep.subr.mxu0 0.0
        %1725 = vmatpush1.msra.mxu0 %v1618
        %1726 = vmatprep.subr.mxu0 0.0
        %1727 = vmatpush1.msra.mxu0 %v1619
        %1728 = vmatprep.subr.mxu0 0.0
        %1729 = vmatpush1.msra.mxu0 %v1620
        %1730 = vmatprep.subr.mxu0 0.0
        %1731 = vmatpush1.msra.mxu0 %v1621
        %1732 = vmatprep.subr.mxu0 0.0
        %1733 = vmatpush1.msra.mxu0 %v1622
        %1734 = vmatprep.subr.mxu0 0.0
        %1735 = vmatpush1.msra.mxu0 %v1623
        %1736 = vmatprep.subr.mxu0 0.0
        %1737 = vmatpush1.msra.mxu0 %v1624
        %1738 = vmatprep.subr.mxu0 0.0
        %1739 = vmatpush1.msra.mxu0 %v1625
        %1740 = vmatprep.subr.mxu0 0.0
        %1741 = vmatpush1.msra.mxu0 %v1626
        %1742 = vmatprep.subr.mxu0 0.0
        %1743 = vmatpush1.msra.mxu0 %v1627
        %1744 = vmatprep.subr.mxu0 0.0
        %1745 = vmatpush1.msra.mxu0 %v1628
        %1746 = vmatprep.subr.mxu0 0.0
        %1747 = vmatpush1.msra.mxu0 %v1629
        %1748 = vmatprep.subr.mxu0 0.0
        %1749 = vmatpush1.msra.mxu0 %v1630
        %1750 = vmatprep.subr.mxu0 0.0
        %1751 = vmatpush1.msra.mxu0 %v1631
        %1752 = vmatprep.subr.mxu0 0.0
        %1753 = vmatpush1.msra.mxu0 %v1632
        %1754 = vmatprep.subr.mxu0 0.0
        %1755 = vmatpush1.msra.mxu0 %v1633
        %1756 = vmatprep.subr.mxu0 0.0
        %1757 = vmatpush1.msra.mxu0 %v1634
        %1758 = vmatprep.subr.mxu0 0.0
        %1759 = vmatpush1.msra.mxu0 %v1635
        %1760 = vmatprep.subr.mxu0 0.0
        %1761 = vmatpush1.msra.mxu0 %v1636
        %1762 = vmatprep.subr.mxu0 0.0
        %1763 = vmatpush1.msra.mxu0 %v1637
        %1764 = vmatprep.subr.mxu0 0.0
        %1765 = vmatpush1.msra.mxu0 %v1638
        %1766 = vmatprep.subr.mxu0 0.0
        %1767 = vmatpush1.msra.mxu0 %v1639
        %1768 = vmatprep.subr.mxu0 0.0
        %1769 = vmatpush1.msra.mxu0 %v1640
        %1770 = vmatprep.subr.mxu0 0.0
        %1771 = vmatpush1.msra.mxu0 %v1641
        %1772 = vmatprep.subr.mxu0 0.0
        %1773 = vmatpush1.msra.mxu0 %v1642
        %1774 = vmatprep.subr.mxu0 0.0
        %1775 = vmatpush1.msra.mxu0 %v1643
        %1776 = vmatprep.subr.mxu0 0.0
        %1777 = vmatpush1.msra.mxu0 %v1644
        %1778 = vmatprep.mubr.f32.mxu0 %v1700
        %1779 = vmatmul.mubr.f32.gmra.mrb[0].mxu0 %v1698
        %v1780 = vpop.f32.mrb[0].mxu0
        %v1781 = vadd.f32 %v1712, %v1780
        %v1782 = vpop.f32.mrb[0].mxu0
        %1783 = vdwg.mxu0
        %1784 = vmatprep.subr.mxu0 0.0
        %1785 = vmatpush1.msra.mxu0 %v1645
        %1786 = vmatprep.subr.mxu0 0.0
        %1787 = vmatpush1.msra.mxu0 %v1646
        %1788 = vmatprep.subr.mxu0 0.0
        %1789 = vmatpush1.msra.mxu0 %v1647
        %1790 = vmatprep.subr.mxu0 0.0
        %1791 = vmatpush1.msra.mxu0 %v1648
        %1792 = vmatprep.subr.mxu0 0.0
        %1793 = vmatpush1.msra.mxu0 %v1649
        %1794 = vmatprep.subr.mxu0 0.0
        %1795 = vmatpush1.msra.mxu0 %v1650
        %1796 = vmatprep.subr.mxu0 0.0
        %1797 = vmatpush1.msra.mxu0 %v1651
        %1798 = vmatprep.subr.mxu0 0.0
        %1799 = vmatpush1.msra.mxu0 %v1652
        %1800 = vmatprep.subr.mxu0 0.0
        %1801 = vmatpush1.msra.mxu0 %v1653
        %1802 = vmatprep.subr.mxu0 0.0
        %1803 = vmatpush1.msra.mxu0 %v1654
        %1804 = vmatprep.subr.mxu0 0.0
        %1805 = vmatpush1.msra.mxu0 %v1655
        %1806 = vmatprep.subr.mxu0 0.0
        %1807 = vmatpush1.msra.mxu0 %v1656
        %1808 = vmatprep.subr.mxu0 0.0
        %1809 = vmatpush1.msra.mxu0 %v1657
        %1810 = vmatprep.subr.mxu0 0.0
        %1811 = vmatpush1.msra.mxu0 %v1658
        %1812 = vmatprep.subr.mxu0 0.0
        %1813 = vmatpush1.msra.mxu0 %v1659
        %1814 = vmatprep.subr.mxu0 0.0
        %1815 = vmatpush1.msra.mxu0 %v1660
        %1816 = vmatprep.subr.mxu0 0.0
        %1817 = vmatpush1.msra.mxu0 %v1661
        %1818 = vmatprep.subr.mxu0 0.0
        %1819 = vmatpush1.msra.mxu0 %v1662
        %1820 = vmatprep.subr.mxu0 0.0
        %1821 = vmatpush1.msra.mxu0 %v1663
        %1822 = vmatprep.subr.mxu0 0.0
        %1823 = vmatpush1.msra.mxu0 %v1664
        %1824 = vmatprep.subr.mxu0 0.0
        %1825 = vmatpush1.msra.mxu0 %v1665
        %1826 = vmatprep.subr.mxu0 0.0
        %1827 = vmatpush1.msra.mxu0 %v1666
        %1828 = vmatprep.subr.mxu0 0.0
        %1829 = vmatpush1.msra.mxu0 %v1667
        %1830 = vmatprep.subr.mxu0 0.0
        %1831 = vmatpush1.msra.mxu0 %v1668
        %1832 = vmatprep.subr.mxu0 0.0
        %1833 = vmatpush1.msra.mxu0 %v1669
        %1834 = vmatprep.subr.mxu0 0.0
        %1835 = vmatpush1.msra.mxu0 %v1670
        %1836 = vmatprep.subr.mxu0 0.0
        %1837 = vmatpush1.msra.mxu0 %v1671
        %1838 = vmatprep.subr.mxu0 0.0
        %1839 = vmatpush1.msra.mxu0 %v1672
        %1840 = vmatprep.subr.mxu0 0.0
        %1841 = vmatpush1.msra.mxu0 %v1673
        %1842 = vmatprep.subr.mxu0 0.0
        %1843 = vmatpush1.msra.mxu0 %v1674
        %1844 = vmatprep.subr.mxu0 0.0
        %1845 = vmatpush1.msra.mxu0 %v1675
        %1846 = vmatprep.subr.mxu0 0.0
        %1847 = vmatpush1.msra.mxu0 %v1676
        %1848 = vmatprep.mubr.f32.mxu0 %v1704
        %1849 = vmatmul.mubr.f32.gmra.mrb[0].mxu0 %v1702
        %v1850 = vpop.f32.mrb[0].mxu0
        %v1851 = vadd.f32 %v1781, %v1850
        %v1852 = vpop.f32.mrb[0].mxu0
        %1853 = vdwg.mxu0
        %1854 = vmatprep.subr.mxu0 0.0
        %1855 = vmatpush1.msra.mxu0 %v1677
        %1856 = vmatprep.subr.mxu0 0.0
        %1857 = vmatpush1.msra.mxu0 %v1678
        %1858 = vmatprep.subr.mxu0 0.0
        %1859 = vmatpush1.msra.mxu0 %v1679
        %1860 = vmatprep.subr.mxu0 0.0
        %1861 = vmatpush1.msra.mxu0 %v1680
        %1862 = vmatprep.subr.mxu0 0.0
        %1863 = vmatpush1.msra.mxu0 %v1681
        %1864 = vmatprep.subr.mxu0 0.0
        %1865 = vmatpush1.msra.mxu0 %v1682
        %1866 = vmatprep.subr.mxu0 0.0
        %1867 = vmatpush1.msra.mxu0 %v1683
        %1868 = vmatprep.subr.mxu0 0.0
        %1869 = vmatpush1.msra.mxu0 %v1684
        %1870 = vmatprep.subr.mxu0 0.0
        %1871 = vmatpush1.msra.mxu0 %v1685
        %1872 = vmatprep.subr.mxu0 0.0
        %1873 = vmatpush1.msra.mxu0 %v1686
        %1874 = vmatprep.subr.mxu0 0.0
        %1875 = vmatpush1.msra.mxu0 %v1687
        %1876 = vmatprep.subr.mxu0 0.0
        %1877 = vmatpush1.msra.mxu0 %v1688
        %1878 = vmatprep.subr.mxu0 0.0
        %1879 = vmatpush1.msra.mxu0 %v1689
        %1880 = vmatprep.subr.mxu0 0.0
        %1881 = vmatpush1.msra.mxu0 %v1690
        %1882 = vmatprep.subr.mxu0 0.0
        %1883 = vmatpush1.msra.mxu0 %v1691
        %1884 = vmatprep.subr.mxu0 0.0
        %1885 = vmatpush1.msra.mxu0 %v1692
        %1886 = vmatprep.subr.mxu0 0.0
        %1887 = vmatpush1.msra.mxu0 0.0
        %1888 = vmatprep.subr.mxu0 0.0
        %1889 = vmatpush1.msra.mxu0 0.0
        %1890 = vmatprep.subr.mxu0 0.0
        %1891 = vmatpush1.msra.mxu0 0.0
        %1892 = vmatprep.subr.mxu0 0.0
        %1893 = vmatpush1.msra.mxu0 0.0
        %1894 = vmatprep.subr.mxu0 0.0
        %1895 = vmatpush1.msra.mxu0 0.0
        %1896 = vmatprep.subr.mxu0 0.0
        %1897 = vmatpush1.msra.mxu0 0.0
        %1898 = vmatprep.subr.mxu0 0.0
        %1899 = vmatpush1.msra.mxu0 0.0
        %1900 = vmatprep.subr.mxu0 0.0
        %1901 = vmatpush1.msra.mxu0 0.0
        %1902 = vmatprep.subr.mxu0 0.0
        %1903 = vmatpush1.msra.mxu0 0.0
        %1904 = vmatprep.subr.mxu0 0.0
        %1905 = vmatpush1.msra.mxu0 0.0
        %1906 = vmatprep.subr.mxu0 0.0
        %1907 = vmatpush1.msra.mxu0 0.0
        %1908 = vmatprep.subr.mxu0 0.0
        %1909 = vmatpush1.msra.mxu0 0.0
        %1910 = vmatprep.subr.mxu0 0.0
        %1911 = vmatpush1.msra.mxu0 0.0
        %1912 = vmatprep.subr.mxu0 0.0
        %1913 = vmatpush1.msra.mxu0 0.0
        %1914 = vmatprep.subr.mxu0 0.0
        %1915 = vmatpush1.msra.mxu0 0.0
        %1916 = vmatprep.subr.mxu0 0.0
        %1917 = vmatpush1.msra.mxu0 0.0
        %1918 = vmatprep.mubr.f32.mxu0 0.0
        %1919 = vmatmul.mubr.f32.gmra.mrb[0].mxu0 %v1706
        %v1920 = vpop.f32.mrb[0].mxu0
        %v1921 = vadd.f32 %v1851, %v1920
        %v1922 = vpop.f32.mrb[0].mxu0
        %1923 = vdwg.mxu0
        %v1924 = vmax.f32 %v1921, 0.0
        %v1925 = vld [vmem:[#allocation8] sm:$0xff]
        %v1926 = vld [vmem:[#allocation8 + $0x8] sm:$0xff]
        %v1927 = vld [vmem:[#allocation8 + $0x10] sm:$0xff]
        %v1928 = vld [vmem:[#allocation8 + $0x18] sm:$0xff]
        %v1929 = vld [vmem:[#allocation8 + $0x20] sm:$0xff]
        %v1930 = vld [vmem:[#allocation8 + $0x28] sm:$0xff]
        %v1931 = vld [vmem:[#allocation8 + $0x30] sm:$0xff]
        %v1932 = vld [vmem:[#allocation8 + $0x38] sm:$0xff]
        %v1933 = vld [vmem:[#allocation8 + $0x40] sm:$0xff]
        %v1934 = vld [vmem:[#allocation8 + $0x48] sm:$0xff]
        %v1935 = vld [vmem:[#allocation8 + $0x50] sm:$0xff]
        %v1936 = vld [vmem:[#allocation8 + $0x58] sm:$0xff]
        %v1937 = vld [vmem:[#allocation8 + $0x60] sm:$0xff]
        %v1938 = vld [vmem:[#allocation8 + $0x68] sm:$0xff]
        %v1939 = vld [vmem:[#allocation8 + $0x70] sm:$0xff]
        %v1940 = vld [vmem:[#allocation8 + $0x78] sm:$0xff]
        %s1941 = scalar_lea.vmem [#allocation8], 128
        %v1942 = vld [vmem:[%s1941] sm:$0xff]
        %v1943 = vld [vmem:[%s1941 + $0x8] sm:$0xff]
        %v1944 = vld [vmem:[%s1941 + $0x10] sm:$0xff]
        %v1945 = vld [vmem:[%s1941 + $0x18] sm:$0xff]
        %v1946 = vld [vmem:[%s1941 + $0x20] sm:$0xff]
        %v1947 = vld [vmem:[%s1941 + $0x28] sm:$0xff]
        %v1948 = vld [vmem:[%s1941 + $0x30] sm:$0xff]
        %v1949 = vld [vmem:[%s1941 + $0x38] sm:$0xff]
        %v1950 = vld [vmem:[%s1941 + $0x40] sm:$0xff]
        %v1951 = vld [vmem:[%s1941 + $0x48] sm:$0xff]
        %v1952 = vld [vmem:[%s1941 + $0x50] sm:$0xff]
        %v1953 = vld [vmem:[%s1941 + $0x58] sm:$0xff]
        %v1954 = vld [vmem:[%s1941 + $0x60] sm:$0xff]
        %v1955 = vld [vmem:[%s1941 + $0x68] sm:$0xff]
        %v1956 = vld [vmem:[%s1941 + $0x70] sm:$0xff]
        %v1957 = vld [vmem:[%s1941 + $0x78] sm:$0xff]
        %v1959 = vrot.slane %v1924, 1
        %1961 = vmatprep.subr.mxu0 0.0
        %1962 = vmatpush1.msra.mxu0 %v1942
        %1963 = vmatprep.subr.mxu0 0.0
        %1964 = vmatpush1.msra.mxu0 %v1943
        %1965 = vmatprep.subr.mxu0 0.0
        %1966 = vmatpush1.msra.mxu0 %v1944
        %1967 = vmatprep.subr.mxu0 0.0
        %1968 = vmatpush1.msra.mxu0 %v1945
        %1969 = vmatprep.subr.mxu0 0.0
        %1970 = vmatpush1.msra.mxu0 %v1946
        %1971 = vmatprep.subr.mxu0 0.0
        %1972 = vmatpush1.msra.mxu0 %v1947
        %1973 = vmatprep.subr.mxu0 0.0
        %1974 = vmatpush1.msra.mxu0 %v1948
        %1975 = vmatprep.subr.mxu0 0.0
        %1976 = vmatpush1.msra.mxu0 %v1949
        %1977 = vmatprep.subr.mxu0 0.0
        %1978 = vmatpush1.msra.mxu0 %v1950
        %1979 = vmatprep.subr.mxu0 0.0
        %1980 = vmatpush1.msra.mxu0 %v1951
        %1981 = vmatprep.subr.mxu0 0.0
        %1982 = vmatpush1.msra.mxu0 %v1952
        %1983 = vmatprep.subr.mxu0 0.0
        %1984 = vmatpush1.msra.mxu0 %v1953
        %1985 = vmatprep.subr.mxu0 0.0
        %1986 = vmatpush1.msra.mxu0 %v1954
        %1987 = vmatprep.subr.mxu0 0.0
        %1988 = vmatpush1.msra.mxu0 %v1955
        %1989 = vmatprep.subr.mxu0 0.0
        %1990 = vmatpush1.msra.mxu0 %v1956
        %1991 = vmatprep.subr.mxu0 0.0
        %1992 = vmatpush1.msra.mxu0 %v1957
        %1993 = vmatprep.subr.mxu0 0.0
        %1994 = vmatpush1.msra.mxu0 0.0
        %1995 = vmatprep.subr.mxu0 0.0
        %1996 = vmatpush1.msra.mxu0 0.0
        %1997 = vmatprep.subr.mxu0 0.0
        %1998 = vmatpush1.msra.mxu0 0.0
        %1999 = vmatprep.subr.mxu0 0.0
        %2000 = vmatpush1.msra.mxu0 0.0
        %2001 = vmatprep.subr.mxu0 0.0
        %2002 = vmatpush1.msra.mxu0 0.0
        %2003 = vmatprep.subr.mxu0 0.0
        %2004 = vmatpush1.msra.mxu0 0.0
        %2005 = vmatprep.subr.mxu0 0.0
        %2006 = vmatpush1.msra.mxu0 0.0
        %2007 = vmatprep.subr.mxu0 0.0
        %2008 = vmatpush1.msra.mxu0 0.0
        %2009 = vmatprep.subr.mxu0 0.0
        %2010 = vmatpush1.msra.mxu0 0.0
        %2011 = vmatprep.subr.mxu0 0.0
        %2012 = vmatpush1.msra.mxu0 0.0
        %2013 = vmatprep.subr.mxu0 0.0
        %2014 = vmatpush1.msra.mxu0 0.0
        %2015 = vmatprep.subr.mxu0 0.0
        %2016 = vmatpush1.msra.mxu0 0.0
        %2017 = vmatprep.subr.mxu0 0.0
        %2018 = vmatpush1.msra.mxu0 0.0
        %2019 = vmatprep.subr.mxu0 0.0
        %2020 = vmatpush1.msra.mxu0 0.0
        %2021 = vmatprep.subr.mxu0 0.0
        %2022 = vmatpush1.msra.mxu0 0.0
        %2023 = vmatprep.subr.mxu0 0.0
        %2024 = vmatpush1.msra.mxu0 0.0
        %2025 = vmatprep.mubr.f32.mxu0 0.0
        %2026 = vmatmul.mubr.f32.gmra.mrb[0].mxu0 %v1959
        %v2027 = vpop.f32.mrb[0].mxu0
        %v2028 = vadd.f32 0.0, %v2027
        %v2029 = vpop.f32.mrb[0].mxu0
        %2030 = vdwg.mxu0
        %2031 = vmatprep.subr.mxu0 0.0
        %2032 = vmatpush1.msra.mxu0 %v1925
        %2033 = vmatprep.subr.mxu0 0.0
        %2034 = vmatpush1.msra.mxu0 %v1926
        %2035 = vmatprep.subr.mxu0 0.0
        %2036 = vmatpush1.msra.mxu0 %v1927
        %2037 = vmatprep.subr.mxu0 0.0
        %2038 = vmatpush1.msra.mxu0 %v1928
        %2039 = vmatprep.subr.mxu0 0.0
        %2040 = vmatpush1.msra.mxu0 %v1929
        %2041 = vmatprep.subr.mxu0 0.0
        %2042 = vmatpush1.msra.mxu0 %v1930
        %2043 = vmatprep.subr.mxu0 0.0
        %2044 = vmatpush1.msra.mxu0 %v1931
        %2045 = vmatprep.subr.mxu0 0.0
        %2046 = vmatpush1.msra.mxu0 %v1932
        %2047 = vmatprep.subr.mxu0 0.0
        %2048 = vmatpush1.msra.mxu0 %v1933
        %2049 = vmatprep.subr.mxu0 0.0
        %2050 = vmatpush1.msra.mxu0 %v1934
        %2051 = vmatprep.subr.mxu0 0.0
        %2052 = vmatpush1.msra.mxu0 %v1935
        %2053 = vmatprep.subr.mxu0 0.0
        %2054 = vmatpush1.msra.mxu0 %v1936
        %2055 = vmatprep.subr.mxu0 0.0
        %2056 = vmatpush1.msra.mxu0 %v1937
        %2057 = vmatprep.subr.mxu0 0.0
        %2058 = vmatpush1.msra.mxu0 %v1938
        %2059 = vmatprep.subr.mxu0 0.0
        %2060 = vmatpush1.msra.mxu0 %v1939
        %2061 = vmatprep.subr.mxu0 0.0
        %2062 = vmatpush1.msra.mxu0 %v1940
        %2063 = vmatprep.subr.mxu0 0.0
        %2064 = vmatpush1.msra.mxu0 0.0
        %2065 = vmatprep.subr.mxu0 0.0
        %2066 = vmatpush1.msra.mxu0 0.0
        %2067 = vmatprep.subr.mxu0 0.0
        %2068 = vmatpush1.msra.mxu0 0.0
        %2069 = vmatprep.subr.mxu0 0.0
        %2070 = vmatpush1.msra.mxu0 0.0
        %2071 = vmatprep.subr.mxu0 0.0
        %2072 = vmatpush1.msra.mxu0 0.0
        %2073 = vmatprep.subr.mxu0 0.0
        %2074 = vmatpush1.msra.mxu0 0.0
        %2075 = vmatprep.subr.mxu0 0.0
        %2076 = vmatpush1.msra.mxu0 0.0
        %2077 = vmatprep.subr.mxu0 0.0
        %2078 = vmatpush1.msra.mxu0 0.0
        %2079 = vmatprep.subr.mxu0 0.0
        %2080 = vmatpush1.msra.mxu0 0.0
        %2081 = vmatprep.subr.mxu0 0.0
        %2082 = vmatpush1.msra.mxu0 0.0
        %2083 = vmatprep.subr.mxu0 0.0
        %2084 = vmatpush1.msra.mxu0 0.0
        %2085 = vmatprep.subr.mxu0 0.0
        %2086 = vmatpush1.msra.mxu0 0.0
        %2087 = vmatprep.subr.mxu0 0.0
        %2088 = vmatpush1.msra.mxu0 0.0
        %2089 = vmatprep.subr.mxu0 0.0
        %2090 = vmatpush1.msra.mxu0 0.0
        %2091 = vmatprep.subr.mxu0 0.0
        %2092 = vmatpush1.msra.mxu0 0.0
        %2093 = vmatprep.subr.mxu0 0.0
        %2094 = vmatpush1.msra.mxu0 0.0
        %2095 = vmatprep.mubr.f32.mxu0 0.0
        %2096 = vmatmul.mubr.f32.gmra.mrb[0].mxu0 %v1924
        %v2097 = vpop.f32.mrb[0].mxu0
        %v2098 = vadd.f32 %v2028, %v2097
        %v2099 = vpop.f32.mrb[0].mxu0
        %2100 = vdwg.mxu0
        %v2101 = vld [vmem:[%s10] sm:$0x1]
        %v2102 = vadd.f32 %v2098, %v2101
        %2103 = vst [vmem:[%s437] sm:$0x1] %v2102
        %s2104 = sand.u32 %s272, 1
        %s2105 = scalar_lea.sflag [#allocation4], %s2104
        %s2106 = sand.u32 %s272, 1
        %s2107 = scalar_lea.vmem [#allocation10], %s2106
        // Predicated region
        $region81: #{conv1d_model_forward.1} parent=63 // pred_check
          %p2108 = pneg %p282
        $region82: #{conv1d_model_forward.1} parent=63 // pred_check_branch
          %2110 = sbr.rel (%p2108) target = $region84
        $region83: #{conv1d_model_forward.1} parent=63 // pred_region
          %s2112 = ssub.s32 16, 16
          %2113 = vsyncadd %s2105, %s2112
          %s2114 = smul.addr %s28, 16
          %s2115 = scalar_lea.hbm %s11, %s2114
          %s2117 = sshll.u32 %s2107, 4
          %s2118 = int_to_ptr.vmem [resolvable:$true] %s2117
          %2120 = dma.vmem_to_hbm [thread:$0]  %s2118, 16, %s2115, %s2105
        $region84: #{conv1d_model_forward.1} parent=63 // pred_fallthru
          _
      $region64: #{conv1d_model_forward.1} parent=5 // pred_fallthru
        _
      %p2121 = scmp.le.s32.totalorder 2, %s23
      // Predicated region
      $region85: #{conv1d_model_forward.1} parent=5 // pred_check
        %p2122 = pneg %p2121
      $region86: #{conv1d_model_forward.1} parent=5 // pred_check_branch
        %2124 = sbr.rel (%p2122) target = $region88
      $region87: #{conv1d_model_forward.1} parent=5 // pred_region
        %s2125 = ssub.s32 %s23, 2
        // Predicated region
        $region89: #{conv1d_model_forward.1} parent=87 // pred_check
          %p2126 = pneg %p288
        $region90: #{conv1d_model_forward.1} parent=87 // pred_check_branch
          %2128 = sbr.rel (%p2126) target = $region92
        $region91: #{conv1d_model_forward.1} parent=87 // pred_region
          %s2129 = sand.u32 %s273, 1
          %s2130 = scalar_lea.sflag [#allocation4], %s2129
          %s2131 = sand.u32 %s273, 1
          %s2132 = scalar_lea.vmem [#allocation10], %s2131
          %2133 = dma.done %s2130, 16
        $region92: #{conv1d_model_forward.1} parent=87 // pred_fallthru
          _
      $region88: #{conv1d_model_forward.1} parent=5 // pred_fallthru
        _
    $region6: #{conv1d_model_forward.1} parent=1 // loop_footer
      %s27 = sadd.s32 1, %s23
    $region7: #{conv1d_model_forward.1} parent=1 // loop_footer_branch
      %22 = sbr.rel target = $region3
    $region8: #{conv1d_model_forward.1} parent=1 // loop_exit
      _
    %2134 = vsyncpa [#allocation3], 1
    %s2135 = scalar_lea.sflag [#allocation3], 1
    %2136 = vsyncpa %s2135, 1
    %2137 = vsyncpa [#allocation6], 1
    %2138 = vsyncpa [#allocation9], 1
    %2139 = vsyncpa [#allocation4], 1
    %s2140 = scalar_lea.sflag [#allocation4], 1
    %2141 = vsyncpa %s2140, 1

</llo_original>
